<compile_context>
chip_gen: v6e
topology: v6e:2x2x1
jax: 0.10.0
libtpu: 0.0.40
codegen_flags: <defaults>
</compile_context>

<pallas_src>
import functools

import jax
import jax.numpy as jnp
from jax import lax
from jax.experimental import pallas as pl
from jax.experimental.pallas import tpu as pltpu


# ----------------------------------------------------------------------------
# Pallas kernels
# ----------------------------------------------------------------------------
def conv_pool_relu_kernel(p_ref, w_ref, b_ref, o_ref, *, num_taps, slab):
    """Fused Conv2d(3x3,valid) + MaxPool2d(4) + ReLU for ALL batch elements.

    p_ref: (num_taps*slab, F)  rows ordered (tap, pooled_pos, batch); slab%8==0
    w_ref: (F, Cout)           im2col conv weight matrix
    b_ref: (1, Cout)
    o_ref: (slab, Cout)        pooled+ReLU'd features, rows (pooled_pos, batch)
    """
    # One big MXU matmul over every (tap, position, batch) row.
    y = jnp.dot(p_ref[...], w_ref[...], preferred_element_type=jnp.float32)
    # MaxPool == elementwise max over the 16 tap slabs (pure VPU work;
    # slab is a multiple of 8 so every slice is sublane-aligned).
    m = y[0:slab]
    for s in range(1, num_taps):
        m = jnp.maximum(m, y[s * slab:(s + 1) * slab])
    # bias is constant within a pooling window -> adding after the max is exact
    o_ref[...] = jnp.maximum(m + b_ref[...], 0.0)


def conv2_head_kernel(p_ref, wc_ref, bc_ref, w1_ref, b1_ref, w2_ref, b2_ref,
                      wav_ref, bav_ref, o_ref, *, num_taps, slab, n_batch,
                      n_actions):
    """Fused conv stage 2 + MLP head + dueling aggregation.

    p_ref : (num_taps*slab, F2)  stage-2 patches, rows (tap, pooled_pos, batch)
    wc_ref: (F2, 64), bc_ref: (1, 64)
    w1/b1 : (64, H), (1, H);  w2/b2: (H, H), (1, H)
    wav   : (H, n_actions+1)  [adv | value] merged;  bav: (1, n_actions+1)
    o_ref : (n_batch, n_actions)  dueling Q-values
    """
    y = jnp.dot(p_ref[...], wc_ref[...], preferred_element_type=jnp.float32)
    m = y[0:slab]
    for s in range(1, num_taps):
        m = jnp.maximum(m, y[s * slab:(s + 1) * slab])
    # real pooled output is 1x1 spatially -> the first n_batch rows are the
    # NCHW-flattened features (padded rows are discarded).
    feat = jnp.maximum(m[0:n_batch] + bc_ref[...], 0.0)            # (N, 64)

    h = jnp.maximum(
        jnp.dot(feat, w1_ref[...], preferred_element_type=jnp.float32)
        + b1_ref[...], 0.0)
    h = jnp.maximum(
        jnp.dot(h, w2_ref[...], preferred_element_type=jnp.float32)
        + b2_ref[...], 0.0)
    av = jnp.dot(h, wav_ref[...], preferred_element_type=jnp.float32) + bav_ref[...]
    adv = av[:, :n_actions]
    val = av[:, n_actions:n_actions + 1]
    o_ref[...] = val + adv - jnp.mean(adv, axis=1, keepdims=True)


# ----------------------------------------------------------------------------
# Wrappers (no grid: whole problem fits comfortably in VMEM; a grid would only
# add ~0.35 us/step pipeline overhead at these shapes)
# ----------------------------------------------------------------------------
def conv_pool_relu(patches, w, b, *, num_taps, slab):
    return pl.pallas_call(
        functools.partial(conv_pool_relu_kernel, num_taps=num_taps, slab=slab),
        out_shape=jax.ShapeDtypeStruct((slab, w.shape[1]), jnp.float32),
    )(patches, w, b)


def conv2_head(patches, wc, bc, w1, b1, w2, b2, wav, bav, *, num_taps, slab,
               n_batch, n_actions):
    return pl.pallas_call(
        functools.partial(conv2_head_kernel, num_taps=num_taps, slab=slab,
                          n_batch=n_batch, n_actions=n_actions),
        out_shape=jax.ShapeDtypeStruct((n_batch, n_actions), jnp.float32),
    )(patches, wc, bc, w1, b1, w2, b2, wav, bav)


# ----------------------------------------------------------------------------
# Plain-JAX glue: im2col + pool-tap regrouping (tap-major, batch folded into M)
# ----------------------------------------------------------------------------
def im2col_pool_tapmajor(x_nhwc, K, pool):
    """Returns patches of shape (pool*pool*Mp*N, K*K*C) with rows ordered
    (tap, pooled_pos, batch).  Mp is the pooled-position count padded (with
    zero rows) so that the per-tap slab Mp*N is a multiple of 8."""
    N, H, W, C = x_nhwc.shape
    Ho, Wo = H - K + 1, W - K + 1
    Hp, Wp = Ho // pool, Wo // pool
    F = K * K * C
    taps = [x_nhwc[:, kh:kh + Ho, kw:kw + Wo, :]
            for kh in range(K) for kw in range(K)]
    pat = jnp.concatenate(taps, axis=-1)                 # (N, Ho, Wo, F)
    pat = pat[:, :Hp * pool, :Wp * pool, :]              # floor-mode crop
    pat = pat.reshape(N, Hp, pool, Wp, pool, F)
    pat = pat.transpose(2, 4, 1, 3, 0, 5)                # (ph, pw, Hp, Wp, N, F)
    M = Hp * Wp
    pat = pat.reshape(pool * pool, M, N, F)              # (P, M, N, F)
    Mp = M
    while (Mp * N) % 8 != 0:
        Mp += 1
    if Mp != M:
        pat = jnp.pad(pat, ((0, 0), (0, Mp - M), (0, 0), (0, 0)))
    return pat.reshape(pool * pool * Mp * N, F), Hp, Wp, Mp


def dqn_forward(x_nchw, P):
    """Full DQN forward.  x_nchw: (N, C, H, W) like the PyTorch module."""
    N = x_nchw.shape[0]
    n_actions = P["wa"].shape[1]
    cout = P["wc1"].shape[1]
    x = jnp.transpose(x_nchw.astype(jnp.float32), (0, 2, 3, 1))    # NCHW->NHWC

    # stage 1: Conv2d(C,64,3) + MaxPool2d(4) + ReLU  (one Pallas call)
    p1, Hp1, Wp1, Mp1 = im2col_pool_tapmajor(x, K=3, pool=4)
    y1 = conv_pool_relu(p1, P["wc1"], P["bc1"], num_taps=16, slab=Mp1 * N)
    x1 = y1.reshape(Mp1, N, cout)[:Hp1 * Wp1]                      # drop pad rows
    x1 = jnp.transpose(x1, (1, 0, 2)).reshape(N, Hp1, Wp1, cout)   # (N,7,7,64)

    # stage 2 + head + dueling, fused into one Pallas call
    p2, Hp2, Wp2, Mp2 = im2col_pool_tapmajor(x1, K=3, pool=4)
    assert Hp2 == 1 and Wp2 == 1, "fused tail assumes 1x1 pooled conv output"
    wav = jnp.concatenate([P["wa"], P["wv"]], axis=1)              # (H, A+1)
    bav = jnp.concatenate([P["ba"], P["bv"]], axis=1)              # (1, A+1)
    return conv2_head(p2, P["wc2"], P["bc2"], P["w1"], P["b1"], P["w2"],
                      P["b2"], wav, bav, num_taps=16, slab=Mp2 * N,
                      n_batch=N, n_actions=n_actions)


# ----------------------------------------------------------------------------
# Pure-JAX reference (for correctness check only)
# ----------------------------------------------------------------------------
def dqn_reference(x_nchw, P):
    x = jnp.transpose(x_nchw.astype(jnp.float32), (0, 2, 3, 1))

    def conv_pool_relu_ref(x, w_mat, b, K=3, pool=4):
        C, Cout = x.shape[-1], w_mat.shape[1]
        w = w_mat.reshape(K, K, C, Cout)                           # HWIO
        y = lax.conv_general_dilated(
            x, w, (1, 1), "VALID",
            dimension_numbers=("NHWC", "HWIO", "NHWC")) + b.reshape(1, 1, 1, Cout)
        y = lax.reduce_window(y, -jnp.inf, lax.max,
                              (1, pool, pool, 1), (1, pool, pool, 1), "VALID")
        return jnp.maximum(y, 0.0)

    x = conv_pool_relu_ref(x, P["wc1"], P["bc1"])
    x = conv_pool_relu_ref(x, P["wc2"], P["bc2"])
    feat = jnp.transpose(x, (0, 3, 1, 2)).reshape(x.shape[0], -1)
    h = jnp.maximum(feat @ P["w1"] + P["b1"], 0.0)
    h = jnp.maximum(h @ P["w2"] + P["b2"], 0.0)
    adv = h @ P["wa"] + P["ba"]
    val = h @ P["wv"] + P["bv"]
    return val + adv - jnp.mean(adv, axis=1, keepdims=True)


# ----------------------------------------------------------------------------
# Deterministic parameter init + driver
# ----------------------------------------------------------------------------
def init_params(key, obs_c, hidden, n_actions, conv_out):
    ks = jax.random.split(key, 8)

    def w(k, shape, fan_in):
        return (jax.random.normal(k, shape, jnp.float32)
                / jnp.sqrt(fan_in)).astype(jnp.float32)

    return {
        "wc1": w(ks[0], (9 * obs_c, 64), 9 * obs_c),
        "bc1": jnp.zeros((1, 64), jnp.float32) + 0.01,
        "wc2": w(ks[1], (9 * 64, 64), 9 * 64),
        "bc2": jnp.zeros((1, 64), jnp.float32) + 0.01,
        "w1": w(ks[2], (conv_out, hidden), conv_out),
        "b1": jnp.zeros((1, hidden), jnp.float32) + 0.01,
        "w2": w(ks[3], (hidden, hidden), hidden),
        "b2": jnp.zeros((1, hidden), jnp.float32) + 0.01,
        "wa": w(ks[4], (hidden, n_actions), hidden),
        "ba": jnp.zeros((1, n_actions), jnp.float32),
        "wv": w(ks[5], (hidden, 1), hidden),
        "bv": jnp.zeros((1, 1), jnp.float32),
    }


if __name__ == "__main__":
    batch, hidden, n_actions = 2, 32, 6
    obs_shape = (4, 32, 32)      # (C, H, W) -> conv_out_size = 64 * 1 * 1 = 64
    conv_out_size = 64

    key = jax.random.PRNGKey(0)
    k_x, k_p = jax.random.split(key)
    x = jax.random.normal(k_x, (batch,) + obs_shape, jnp.float32)
    params = init_params(k_p, obs_shape[0], hidden, n_actions, conv_out_size)

    q = jax.block_until_ready(jax.jit(dqn_forward)(x, params))
    q_ref = jax.block_until_ready(jax.jit(dqn_reference)(x, params))

    assert q.shape == (batch, n_actions)
    assert jnp.allclose(q, q_ref, atol=1e-4, rtol=1e-4), (q, q_ref)

    print("KERNEL_OK")
</pallas_src>

<mosaic_0001>
module attributes {stable_mosaic.version = 11 : i64} {
  func.func @conv_pool_relu_kernel(%arg0: memref<1664x36xf32, #tpu.memory_space<vmem>>, %arg1: memref<36x64xf32, #tpu.memory_space<vmem>>, %arg2: memref<1x64xf32, #tpu.memory_space<vmem>>, %arg3: memref<104x64xf32, #tpu.memory_space<vmem>>) attributes {dimension_semantics = [], scalar_prefetch = 0 : i64, scratch_operands = 0 : i64, tpu.core_type = #tpu.core_type<tc>} {
    %c0 = arith.constant 0 : index
    %c0_0 = arith.constant 0 : index
    %0 = vector.load %arg0[%c0, %c0_0] : memref<1664x36xf32, #tpu.memory_space<vmem>>, vector<1664x36xf32>
    %c0_1 = arith.constant 0 : index
    %c0_2 = arith.constant 0 : index
    %1 = vector.load %arg1[%c0_1, %c0_2] : memref<36x64xf32, #tpu.memory_space<vmem>>, vector<36x64xf32>
    %cst = arith.constant dense<0.000000e+00> : vector<1664x64xf32>
    %2 = tpu.matmul %0, %1, %cst {dimension_numbers = #tpu.dot_dimension_numbers<[1], [0], [0], [1], [0, 0, 1, 1], [], []>} : vector<1664x36xf32>, vector<36x64xf32>, vector<1664x64xf32> -> vector<1664x64xf32>
    %3 = vector.extract_strided_slice %2 {offsets = [0, 0], sizes = [104, 64], strides = [1, 1]} : vector<1664x64xf32> to vector<104x64xf32>
    %4 = vector.extract_strided_slice %2 {offsets = [104, 0], sizes = [104, 64], strides = [1, 1]} : vector<1664x64xf32> to vector<104x64xf32>
    %5 = arith.maximumf %3, %4 : vector<104x64xf32>
    %6 = vector.extract_strided_slice %2 {offsets = [208, 0], sizes = [104, 64], strides = [1, 1]} : vector<1664x64xf32> to vector<104x64xf32>
    %7 = arith.maximumf %5, %6 : vector<104x64xf32>
    %8 = vector.extract_strided_slice %2 {offsets = [312, 0], sizes = [104, 64], strides = [1, 1]} : vector<1664x64xf32> to vector<104x64xf32>
    %9 = arith.maximumf %7, %8 : vector<104x64xf32>
    %10 = vector.extract_strided_slice %2 {offsets = [416, 0], sizes = [104, 64], strides = [1, 1]} : vector<1664x64xf32> to vector<104x64xf32>
    %11 = arith.maximumf %9, %10 : vector<104x64xf32>
    %12 = vector.extract_strided_slice %2 {offsets = [520, 0], sizes = [104, 64], strides = [1, 1]} : vector<1664x64xf32> to vector<104x64xf32>
    %13 = arith.maximumf %11, %12 : vector<104x64xf32>
    %14 = vector.extract_strided_slice %2 {offsets = [624, 0], sizes = [104, 64], strides = [1, 1]} : vector<1664x64xf32> to vector<104x64xf32>
    %15 = arith.maximumf %13, %14 : vector<104x64xf32>
    %16 = vector.extract_strided_slice %2 {offsets = [728, 0], sizes = [104, 64], strides = [1, 1]} : vector<1664x64xf32> to vector<104x64xf32>
    %17 = arith.maximumf %15, %16 : vector<104x64xf32>
    %18 = vector.extract_strided_slice %2 {offsets = [832, 0], sizes = [104, 64], strides = [1, 1]} : vector<1664x64xf32> to vector<104x64xf32>
    %19 = arith.maximumf %17, %18 : vector<104x64xf32>
    %20 = vector.extract_strided_slice %2 {offsets = [936, 0], sizes = [104, 64], strides = [1, 1]} : vector<1664x64xf32> to vector<104x64xf32>
    %21 = arith.maximumf %19, %20 : vector<104x64xf32>
    %22 = vector.extract_strided_slice %2 {offsets = [1040, 0], sizes = [104, 64], strides = [1, 1]} : vector<1664x64xf32> to vector<104x64xf32>
    %23 = arith.maximumf %21, %22 : vector<104x64xf32>
    %24 = vector.extract_strided_slice %2 {offsets = [1144, 0], sizes = [104, 64], strides = [1, 1]} : vector<1664x64xf32> to vector<104x64xf32>
    %25 = arith.maximumf %23, %24 : vector<104x64xf32>
    %26 = vector.extract_strided_slice %2 {offsets = [1248, 0], sizes = [104, 64], strides = [1, 1]} : vector<1664x64xf32> to vector<104x64xf32>
    %27 = arith.maximumf %25, %26 : vector<104x64xf32>
    %28 = vector.extract_strided_slice %2 {offsets = [1352, 0], sizes = [104, 64], strides = [1, 1]} : vector<1664x64xf32> to vector<104x64xf32>
    %29 = arith.maximumf %27, %28 : vector<104x64xf32>
    %30 = vector.extract_strided_slice %2 {offsets = [1456, 0], sizes = [104, 64], strides = [1, 1]} : vector<1664x64xf32> to vector<104x64xf32>
    %31 = arith.maximumf %29, %30 : vector<104x64xf32>
    %32 = vector.extract_strided_slice %2 {offsets = [1560, 0], sizes = [104, 64], strides = [1, 1]} : vector<1664x64xf32> to vector<104x64xf32>
    %33 = arith.maximumf %31, %32 : vector<104x64xf32>
    %c0_3 = arith.constant 0 : index
    %c0_4 = arith.constant 0 : index
    %34 = vector.load %arg2[%c0_3, %c0_4] : memref<1x64xf32, #tpu.memory_space<vmem>>, vector<1x64xf32>
    %35 = vector.broadcast %34 : vector<1x64xf32> to vector<104x64xf32>
    %36 = arith.addf %33, %35 : vector<104x64xf32>
    %cst_5 = arith.constant 0.000000e+00 : f32
    %37 = vector.broadcast %cst_5 : f32 to vector<104x64xf32>
    %38 = arith.maximumf %36, %37 : vector<104x64xf32>
    %c0_6 = arith.constant 0 : index
    %c0_7 = arith.constant 0 : index
    %39 = vector.load %arg3[%c0_6, %c0_7] : memref<104x64xf32, #tpu.memory_space<vmem>>, vector<104x64xf32>
    tpu.vector_store %arg3[%c0_6, %c0_7], %38 {strides = array<i32>} : memref<104x64xf32, #tpu.memory_space<vmem>>, vector<104x64xf32>,
    return
  }
}

module attributes {stable_mosaic.version = 11 : i64} {
  func.func @conv2_head_kernel(%arg0: memref<128x576xf32, #tpu.memory_space<vmem>>, %arg1: memref<576x64xf32, #tpu.memory_space<vmem>>, %arg2: memref<1x64xf32, #tpu.memory_space<vmem>>, %arg3: memref<64x32xf32, #tpu.memory_space<vmem>>, %arg4: memref<1x32xf32, #tpu.memory_space<vmem>>, %arg5: memref<32x32xf32, #tpu.memory_space<vmem>>, %arg6: memref<1x32xf32, #tpu.memory_space<vmem>>, %arg7: memref<32x7xf32, #tpu.memory_space<vmem>>, %arg8: memref<1x7xf32, #tpu.memory_space<vmem>>, %arg9: memref<2x6xf32, #tpu.memory_space<vmem>>) attributes {dimension_semantics = [], scalar_prefetch = 0 : i64, scratch_operands = 0 : i64, tpu.core_type = #tpu.core_type<tc>} {
    %c0 = arith.constant 0 : index
    %c0_0 = arith.constant 0 : index
    %0 = vector.load %arg0[%c0, %c0_0] : memref<128x576xf32, #tpu.memory_space<vmem>>, vector<128x576xf32>
    %c0_1 = arith.constant 0 : index
    %c0_2 = arith.constant 0 : index
    %1 = vector.load %arg1[%c0_1, %c0_2] : memref<576x64xf32, #tpu.memory_space<vmem>>, vector<576x64xf32>
    %cst = arith.constant dense<0.000000e+00> : vector<128x64xf32>
    %2 = tpu.matmul %0, %1, %cst {dimension_numbers = #tpu.dot_dimension_numbers<[1], [0], [0], [1], [0, 0, 1, 1], [], []>} : vector<128x576xf32>, vector<576x64xf32>, vector<128x64xf32> -> vector<128x64xf32>
    %3 = vector.extract_strided_slice %2 {offsets = [0, 0], sizes = [8, 64], strides = [1, 1]} : vector<128x64xf32> to vector<8x64xf32>
    %4 = vector.extract_strided_slice %2 {offsets = [8, 0], sizes = [8, 64], strides = [1, 1]} : vector<128x64xf32> to vector<8x64xf32>
    %5 = arith.maximumf %3, %4 : vector<8x64xf32>
    %6 = vector.extract_strided_slice %2 {offsets = [16, 0], sizes = [8, 64], strides = [1, 1]} : vector<128x64xf32> to vector<8x64xf32>
    %7 = arith.maximumf %5, %6 : vector<8x64xf32>
    %8 = vector.extract_strided_slice %2 {offsets = [24, 0], sizes = [8, 64], strides = [1, 1]} : vector<128x64xf32> to vector<8x64xf32>
    %9 = arith.maximumf %7, %8 : vector<8x64xf32>
    %10 = vector.extract_strided_slice %2 {offsets = [32, 0], sizes = [8, 64], strides = [1, 1]} : vector<128x64xf32> to vector<8x64xf32>
    %11 = arith.maximumf %9, %10 : vector<8x64xf32>
    %12 = vector.extract_strided_slice %2 {offsets = [40, 0], sizes = [8, 64], strides = [1, 1]} : vector<128x64xf32> to vector<8x64xf32>
    %13 = arith.maximumf %11, %12 : vector<8x64xf32>
    %14 = vector.extract_strided_slice %2 {offsets = [48, 0], sizes = [8, 64], strides = [1, 1]} : vector<128x64xf32> to vector<8x64xf32>
    %15 = arith.maximumf %13, %14 : vector<8x64xf32>
    %16 = vector.extract_strided_slice %2 {offsets = [56, 0], sizes = [8, 64], strides = [1, 1]} : vector<128x64xf32> to vector<8x64xf32>
    %17 = arith.maximumf %15, %16 : vector<8x64xf32>
    %18 = vector.extract_strided_slice %2 {offsets = [64, 0], sizes = [8, 64], strides = [1, 1]} : vector<128x64xf32> to vector<8x64xf32>
    %19 = arith.maximumf %17, %18 : vector<8x64xf32>
    %20 = vector.extract_strided_slice %2 {offsets = [72, 0], sizes = [8, 64], strides = [1, 1]} : vector<128x64xf32> to vector<8x64xf32>
    %21 = arith.maximumf %19, %20 : vector<8x64xf32>
    %22 = vector.extract_strided_slice %2 {offsets = [80, 0], sizes = [8, 64], strides = [1, 1]} : vector<128x64xf32> to vector<8x64xf32>
    %23 = arith.maximumf %21, %22 : vector<8x64xf32>
    %24 = vector.extract_strided_slice %2 {offsets = [88, 0], sizes = [8, 64], strides = [1, 1]} : vector<128x64xf32> to vector<8x64xf32>
    %25 = arith.maximumf %23, %24 : vector<8x64xf32>
    %26 = vector.extract_strided_slice %2 {offsets = [96, 0], sizes = [8, 64], strides = [1, 1]} : vector<128x64xf32> to vector<8x64xf32>
    %27 = arith.maximumf %25, %26 : vector<8x64xf32>
    %28 = vector.extract_strided_slice %2 {offsets = [104, 0], sizes = [8, 64], strides = [1, 1]} : vector<128x64xf32> to vector<8x64xf32>
    %29 = arith.maximumf %27, %28 : vector<8x64xf32>
    %30 = vector.extract_strided_slice %2 {offsets = [112, 0], sizes = [8, 64], strides = [1, 1]} : vector<128x64xf32> to vector<8x64xf32>
    %31 = arith.maximumf %29, %30 : vector<8x64xf32>
    %32 = vector.extract_strided_slice %2 {offsets = [120, 0], sizes = [8, 64], strides = [1, 1]} : vector<128x64xf32> to vector<8x64xf32>
    %33 = arith.maximumf %31, %32 : vector<8x64xf32>
    %34 = vector.extract_strided_slice %33 {offsets = [0, 0], sizes = [2, 64], strides = [1, 1]} : vector<8x64xf32> to vector<2x64xf32>
    %c0_3 = arith.constant 0 : index
    %c0_4 = arith.constant 0 : index
    %35 = vector.load %arg2[%c0_3, %c0_4] : memref<1x64xf32, #tpu.memory_space<vmem>>, vector<1x64xf32>
    %36 = vector.broadcast %35 : vector<1x64xf32> to vector<2x64xf32>
    %37 = arith.addf %34, %36 : vector<2x64xf32>
    %cst_5 = arith.constant 0.000000e+00 : f32
    %38 = vector.broadcast %cst_5 : f32 to vector<2x64xf32>
    %39 = arith.maximumf %37, %38 : vector<2x64xf32>
    %c0_6 = arith.constant 0 : index
    %c0_7 = arith.constant 0 : index
    %40 = vector.load %arg3[%c0_6, %c0_7] : memref<64x32xf32, #tpu.memory_space<vmem>>, vector<64x32xf32>
    %cst_8 = arith.constant dense<0.000000e+00> : vector<2x32xf32>
    %41 = tpu.matmul %39, %40, %cst_8 {dimension_numbers = #tpu.dot_dimension_numbers<[1], [0], [0], [1], [0, 0, 1, 1], [], []>} : vector<2x64xf32>, vector<64x32xf32>, vector<2x32xf32> -> vector<2x32xf32>
    %c0_9 = arith.constant 0 : index
    %c0_10 = arith.constant 0 : index
    %42 = vector.load %arg4[%c0_9, %c0_10] : memref<1x32xf32, #tpu.memory_space<vmem>>, vector<1x32xf32>
    %43 = vector.broadcast %42 : vector<1x32xf32> to vector<2x32xf32>
    %44 = arith.addf %41, %43 : vector<2x32xf32>
    %cst_11 = arith.constant 0.000000e+00 : f32
    %45 = vector.broadcast %cst_11 : f32 to vector<2x32xf32>
    %46 = arith.maximumf %44, %45 : vector<2x32xf32>
    %c0_12 = arith.constant 0 : index
    %c0_13 = arith.constant 0 : index
    %47 = vector.load %arg5[%c0_12, %c0_13] : memref<32x32xf32, #tpu.memory_space<vmem>>, vector<32x32xf32>
    %cst_14 = arith.constant dense<0.000000e+00> : vector<2x32xf32>
    %48 = tpu.matmul %46, %47, %cst_14 {dimension_numbers = #tpu.dot_dimension_numbers<[1], [0], [0], [1], [0, 0, 1, 1], [], []>} : vector<2x32xf32>, vector<32x32xf32>, vector<2x32xf32> -> vector<2x32xf32>
    %c0_15 = arith.constant 0 : index
    %c0_16 = arith.constant 0 : index
    %49 = vector.load %arg6[%c0_15, %c0_16] : memref<1x32xf32, #tpu.memory_space<vmem>>, vector<1x32xf32>
    %50 = vector.broadcast %49 : vector<1x32xf32> to vector<2x32xf32>
    %51 = arith.addf %48, %50 : vector<2x32xf32>
    %cst_17 = arith.constant 0.000000e+00 : f32
    %52 = vector.broadcast %cst_17 : f32 to vector<2x32xf32>
    %53 = arith.maximumf %51, %52 : vector<2x32xf32>
    %c0_18 = arith.constant 0 : index
    %c0_19 = arith.constant 0 : index
    %54 = vector.load %arg7[%c0_18, %c0_19] : memref<32x7xf32, #tpu.memory_space<vmem>>, vector<32x7xf32>
    %cst_20 = arith.constant dense<0.000000e+00> : vector<2x7xf32>
    %55 = tpu.matmul %53, %54, %cst_20 {dimension_numbers = #tpu.dot_dimension_numbers<[1], [0], [0], [1], [0, 0, 1, 1], [], []>} : vector<2x32xf32>, vector<32x7xf32>, vector<2x7xf32> -> vector<2x7xf32>
    %c0_21 = arith.constant 0 : index
    %c0_22 = arith.constant 0 : index
    %56 = vector.load %arg8[%c0_21, %c0_22] : memref<1x7xf32, #tpu.memory_space<vmem>>, vector<1x7xf32>
    %57 = vector.broadcast %56 : vector<1x7xf32> to vector<2x7xf32>
    %58 = arith.addf %55, %57 : vector<2x7xf32>
    %59 = vector.extract_strided_slice %58 {offsets = [0, 0], sizes = [2, 6], strides = [1, 1]} : vector<2x7xf32> to vector<2x6xf32>
    %60 = vector.extract_strided_slice %58 {offsets = [0, 6], sizes = [2, 1], strides = [1, 1]} : vector<2x7xf32> to vector<2x1xf32>
    %61 = vector.broadcast %60 : vector<2x1xf32> to vector<2x6xf32>
    %62 = arith.addf %61, %59 : vector<2x6xf32>
    %cst_23 = arith.constant dense<0.000000e+00> : vector<2xf32>
    %63 = vector.multi_reduction <add>, %59, %cst_23 [1] : vector<2x6xf32> to vector<2xf32>
    %64 = vector.shape_cast %63 : vector<2xf32> to vector<2x1xf32>
    %cst_24 = arith.constant 6.000000e+00 : f32
    %65 = vector.broadcast %cst_24 : f32 to vector<2x1xf32>
    %66 = arith.divf %64, %65 : vector<2x1xf32>
    %67 = vector.broadcast %66 : vector<2x1xf32> to vector<2x6xf32>
    %68 = arith.subf %62, %67 : vector<2x6xf32>
    %c0_25 = arith.constant 0 : index
    %c0_26 = arith.constant 0 : index
    %69 = vector.load %arg9[%c0_25, %c0_26] : memref<2x6xf32, #tpu.memory_space<vmem>>, vector<2x6xf32>
    tpu.vector_store %arg9[%c0_25, %c0_26], %68 {strides = array<i32>} : memref<2x6xf32, #tpu.memory_space<vmem>>, vector<2x6xf32>,
    return
  }
}

</mosaic_0001>

<llo_original>
// kernel: dqn_forward.2
$region0: #{dqn_forward.2}
  #allocation0 [shape = 'u32[]', space=smem, size = 0x4, offset = 0x4, fixed_abs, tag = 'smem constant byte address 0x4 - core index']
  #allocation1 [shape = 'u32[144,128]{1,0:T(1,128)}', space=vmem, size = 0x12000, scoped, tag = 'internal scratch']
  %s0 = inlined_call_operand.vmem [shape: f32[1664,36], index: 0, kind: input, shape index: {}]
  %s1 = inlined_call_operand.vmem [shape: f32[36,64], index: 1, kind: input, shape index: {}]
  %s2 = inlined_call_operand.vmem [shape: f32[1,64], index: 2, kind: input, shape index: {}]
  %s3 = inlined_call_operand.vmem [shape: f32[104,64], index: 3, kind: output, shape index: {}]
  %s4 = sld [smem:[#allocation0]]
  $region22: #{dqn_forward.2} parent=0
    _
  %s6 = ssub.s32 1, %s4
  %s7 = scalar_select 0, %s6, %s4
  // Predicated region
  $region2: #{dqn_forward.2} parent=0 // pred_check
    _
  $region3: #{dqn_forward.2} parent=0 // pred_check_branch
    %9 = sbr.rel (0) target = $region5
  $region4: #{dqn_forward.2} parent=0 // pred_region
    _
  $region5: #{dqn_forward.2} parent=0 // pred_fallthru
    _
  // Predicated region
  $region6: #{dqn_forward.2} parent=0 // pred_check
    _
  $region7: #{dqn_forward.2} parent=0 // pred_check_branch
    %11 = sbr.rel (0) target = $region9
  $region8: #{dqn_forward.2} parent=0 // pred_region
    _
  $region9: #{dqn_forward.2} parent=0 // pred_fallthru
    _
  // Predicated region
  $region10: #{dqn_forward.2} parent=0 // pred_check
    _
  $region11: #{dqn_forward.2} parent=0 // pred_check_branch
    %13 = sbr.rel (0) target = $region13
  $region12: #{dqn_forward.2} parent=0 // pred_region
    _
  $region13: #{dqn_forward.2} parent=0 // pred_fallthru
    _
  %v14 = vld [vmem:[%s0] sm:$0xff]
  %v15 = vld [vmem:[%s0 + $0x8] sm:$0xff]
  %v16 = vld [vmem:[%s0 + $0x10] sm:$0xff]
  %v17 = vld [vmem:[%s0 + $0x18] sm:$0xff]
  %v18 = vld [vmem:[%s0 + $0x20] sm:$0xff]
  %v19 = vld [vmem:[%s0 + $0x28] sm:$0xff]
  %v20 = vld [vmem:[%s0 + $0x30] sm:$0xff]
  %v21 = vld [vmem:[%s0 + $0x38] sm:$0xff]
  %v22 = vld [vmem:[%s0 + $0x40] sm:$0xff]
  %v23 = vld [vmem:[%s0 + $0x48] sm:$0xff]
  %v24 = vld [vmem:[%s0 + $0x50] sm:$0xff]
  %v25 = vld [vmem:[%s0 + $0x58] sm:$0xff]
  %v26 = vld [vmem:[%s0 + $0x60] sm:$0xff]
  %v27 = vld [vmem:[%s0 + $0x68] sm:$0xff]
  %v28 = vld [vmem:[%s0 + $0x70] sm:$0xff]
  %v29 = vld [vmem:[%s0 + $0x78] sm:$0xff]
  %v30 = vld [vmem:[%s0 + $0x80] sm:$0xff]
  %v31 = vld [vmem:[%s0 + $0x88] sm:$0xff]
  %v32 = vld [vmem:[%s0 + $0x90] sm:$0xff]
  %v33 = vld [vmem:[%s0 + $0x98] sm:$0xff]
  %v34 = vld [vmem:[%s0 + $0xa0] sm:$0xff]
  %v35 = vld [vmem:[%s0 + $0xa8] sm:$0xff]
  %v36 = vld [vmem:[%s0 + $0xb0] sm:$0xff]
  %v37 = vld [vmem:[%s0 + $0xb8] sm:$0xff]
  %v38 = vld [vmem:[%s0 + $0xc0] sm:$0xff]
  %v39 = vld [vmem:[%s0 + $0xc8] sm:$0xff]
  %v40 = vld [vmem:[%s0 + $0xd0] sm:$0xff]
  %v41 = vld [vmem:[%s0 + $0xd8] sm:$0xff]
  %v42 = vld [vmem:[%s0 + $0xe0] sm:$0xff]
  %v43 = vld [vmem:[%s0 + $0xe8] sm:$0xff]
  %v44 = vld [vmem:[%s0 + $0xf0] sm:$0xff]
  %v45 = vld [vmem:[%s0 + $0xf8] sm:$0xff]
  %v46 = vld [vmem:[%s0 + $0x100] sm:$0xff]
  %v47 = vld [vmem:[%s0 + $0x108] sm:$0xff]
  %v48 = vld [vmem:[%s0 + $0x110] sm:$0xff]
  %v49 = vld [vmem:[%s0 + $0x118] sm:$0xff]
  %v50 = vld [vmem:[%s0 + $0x120] sm:$0xff]
  %v51 = vld [vmem:[%s0 + $0x128] sm:$0xff]
  %v52 = vld [vmem:[%s0 + $0x130] sm:$0xff]
  %v53 = vld [vmem:[%s0 + $0x138] sm:$0xff]
  %v54 = vld [vmem:[%s0 + $0x140] sm:$0xff]
  %v55 = vld [vmem:[%s0 + $0x148] sm:$0xff]
  %v56 = vld [vmem:[%s0 + $0x150] sm:$0xff]
  %v57 = vld [vmem:[%s0 + $0x158] sm:$0xff]
  %v58 = vld [vmem:[%s0 + $0x160] sm:$0xff]
  %v59 = vld [vmem:[%s0 + $0x168] sm:$0xff]
  %v60 = vld [vmem:[%s0 + $0x170] sm:$0xff]
  %v61 = vld [vmem:[%s0 + $0x178] sm:$0xff]
  %v62 = vld [vmem:[%s0 + $0x180] sm:$0xff]
  %v63 = vld [vmem:[%s0 + $0x188] sm:$0xff]
  %v64 = vld [vmem:[%s0 + $0x190] sm:$0xff]
  %v65 = vld [vmem:[%s0 + $0x198] sm:$0xff]
  %v66 = vld [vmem:[%s0 + $0x1a0] sm:$0xff]
  %v67 = vld [vmem:[%s0 + $0x1a8] sm:$0xff]
  %v68 = vld [vmem:[%s0 + $0x1b0] sm:$0xff]
  %v69 = vld [vmem:[%s0 + $0x1b8] sm:$0xff]
  %v70 = vld [vmem:[%s0 + $0x1c0] sm:$0xff]
  %v71 = vld [vmem:[%s0 + $0x1c8] sm:$0xff]
  %v72 = vld [vmem:[%s0 + $0x1d0] sm:$0xff]
  %v73 = vld [vmem:[%s0 + $0x1d8] sm:$0xff]
  %v74 = vld [vmem:[%s0 + $0x1e0] sm:$0xff]
  %v75 = vld [vmem:[%s0 + $0x1e8] sm:$0xff]
  %v76 = vld [vmem:[%s0 + $0x1f0] sm:$0xff]
  %v77 = vld [vmem:[%s0 + $0x1f8] sm:$0xff]
  %v78 = vld [vmem:[%s0 + $0x200] sm:$0xff]
  %v79 = vld [vmem:[%s0 + $0x208] sm:$0xff]
  %v80 = vld [vmem:[%s0 + $0x210] sm:$0xff]
  %v81 = vld [vmem:[%s0 + $0x218] sm:$0xff]
  %v82 = vld [vmem:[%s0 + $0x220] sm:$0xff]
  %v83 = vld [vmem:[%s0 + $0x228] sm:$0xff]
  %v84 = vld [vmem:[%s0 + $0x230] sm:$0xff]
  %v85 = vld [vmem:[%s0 + $0x238] sm:$0xff]
  %v86 = vld [vmem:[%s0 + $0x240] sm:$0xff]
  %v87 = vld [vmem:[%s0 + $0x248] sm:$0xff]
  %v88 = vld [vmem:[%s0 + $0x250] sm:$0xff]
  %v89 = vld [vmem:[%s0 + $0x258] sm:$0xff]
  %v90 = vld [vmem:[%s0 + $0x260] sm:$0xff]
  %v91 = vld [vmem:[%s0 + $0x268] sm:$0xff]
  %v92 = vld [vmem:[%s0 + $0x270] sm:$0xff]
  %v93 = vld [vmem:[%s0 + $0x278] sm:$0xff]
  %v94 = vld [vmem:[%s0 + $0x280] sm:$0xff]
  %v95 = vld [vmem:[%s0 + $0x288] sm:$0xff]
  %v96 = vld [vmem:[%s0 + $0x290] sm:$0xff]
  %v97 = vld [vmem:[%s0 + $0x298] sm:$0xff]
  %v98 = vld [vmem:[%s0 + $0x2a0] sm:$0xff]
  %v99 = vld [vmem:[%s0 + $0x2a8] sm:$0xff]
  %v100 = vld [vmem:[%s0 + $0x2b0] sm:$0xff]
  %v101 = vld [vmem:[%s0 + $0x2b8] sm:$0xff]
  %v102 = vld [vmem:[%s0 + $0x2c0] sm:$0xff]
  %v103 = vld [vmem:[%s0 + $0x2c8] sm:$0xff]
  %v104 = vld [vmem:[%s0 + $0x2d0] sm:$0xff]
  %v105 = vld [vmem:[%s0 + $0x2d8] sm:$0xff]
  %v106 = vld [vmem:[%s0 + $0x2e0] sm:$0xff]
  %v107 = vld [vmem:[%s0 + $0x2e8] sm:$0xff]
  %v108 = vld [vmem:[%s0 + $0x2f0] sm:$0xff]
  %v109 = vld [vmem:[%s0 + $0x2f8] sm:$0xff]
  %v110 = vld [vmem:[%s0 + $0x300] sm:$0xff]
  %v111 = vld [vmem:[%s0 + $0x308] sm:$0xff]
  %v112 = vld [vmem:[%s0 + $0x310] sm:$0xff]
  %v113 = vld [vmem:[%s0 + $0x318] sm:$0xff]
  %v114 = vld [vmem:[%s0 + $0x320] sm:$0xff]
  %v115 = vld [vmem:[%s0 + $0x328] sm:$0xff]
  %v116 = vld [vmem:[%s0 + $0x330] sm:$0xff]
  %v117 = vld [vmem:[%s0 + $0x338] sm:$0xff]
  %v118 = vld [vmem:[%s0 + $0x340] sm:$0xff]
  %v119 = vld [vmem:[%s0 + $0x348] sm:$0xff]
  %v120 = vld [vmem:[%s0 + $0x350] sm:$0xff]
  %v121 = vld [vmem:[%s0 + $0x358] sm:$0xff]
  %v122 = vld [vmem:[%s0 + $0x360] sm:$0xff]
  %v123 = vld [vmem:[%s0 + $0x368] sm:$0xff]
  %v124 = vld [vmem:[%s0 + $0x370] sm:$0xff]
  %v125 = vld [vmem:[%s0 + $0x378] sm:$0xff]
  %v126 = vld [vmem:[%s0 + $0x380] sm:$0xff]
  %v127 = vld [vmem:[%s0 + $0x388] sm:$0xff]
  %v128 = vld [vmem:[%s0 + $0x390] sm:$0xff]
  %v129 = vld [vmem:[%s0 + $0x398] sm:$0xff]
  %v130 = vld [vmem:[%s0 + $0x3a0] sm:$0xff]
  %v131 = vld [vmem:[%s0 + $0x3a8] sm:$0xff]
  %v132 = vld [vmem:[%s0 + $0x3b0] sm:$0xff]
  %v133 = vld [vmem:[%s0 + $0x3b8] sm:$0xff]
  %v134 = vld [vmem:[%s0 + $0x3c0] sm:$0xff]
  %v135 = vld [vmem:[%s0 + $0x3c8] sm:$0xff]
  %v136 = vld [vmem:[%s0 + $0x3d0] sm:$0xff]
  %v137 = vld [vmem:[%s0 + $0x3d8] sm:$0xff]
  %v138 = vld [vmem:[%s0 + $0x3e0] sm:$0xff]
  %v139 = vld [vmem:[%s0 + $0x3e8] sm:$0xff]
  %v140 = vld [vmem:[%s0 + $0x3f0] sm:$0xff]
  %v141 = vld [vmem:[%s0 + $0x3f8] sm:$0xff]
  %v142 = vld [vmem:[%s0 + $0x400] sm:$0xff]
  %v143 = vld [vmem:[%s0 + $0x408] sm:$0xff]
  %v144 = vld [vmem:[%s0 + $0x410] sm:$0xff]
  %v145 = vld [vmem:[%s0 + $0x418] sm:$0xff]
  %v146 = vld [vmem:[%s0 + $0x420] sm:$0xff]
  %v147 = vld [vmem:[%s0 + $0x428] sm:$0xff]
  %v148 = vld [vmem:[%s0 + $0x430] sm:$0xff]
  %v149 = vld [vmem:[%s0 + $0x438] sm:$0xff]
  %v150 = vld [vmem:[%s0 + $0x440] sm:$0xff]
  %v151 = vld [vmem:[%s0 + $0x448] sm:$0xff]
  %v152 = vld [vmem:[%s0 + $0x450] sm:$0xff]
  %v153 = vld [vmem:[%s0 + $0x458] sm:$0xff]
  %v154 = vld [vmem:[%s0 + $0x460] sm:$0xff]
  %v155 = vld [vmem:[%s0 + $0x468] sm:$0xff]
  %v156 = vld [vmem:[%s0 + $0x470] sm:$0xff]
  %v157 = vld [vmem:[%s0 + $0x478] sm:$0xff]
  %v158 = vld [vmem:[%s0 + $0x480] sm:$0xff]
  %v159 = vld [vmem:[%s0 + $0x488] sm:$0xff]
  %v160 = vld [vmem:[%s0 + $0x490] sm:$0xff]
  %v161 = vld [vmem:[%s0 + $0x498] sm:$0xff]
  %v162 = vld [vmem:[%s0 + $0x4a0] sm:$0xff]
  %v163 = vld [vmem:[%s0 + $0x4a8] sm:$0xff]
  %v164 = vld [vmem:[%s0 + $0x4b0] sm:$0xff]
  %v165 = vld [vmem:[%s0 + $0x4b8] sm:$0xff]
  %v166 = vld [vmem:[%s0 + $0x4c0] sm:$0xff]
  %v167 = vld [vmem:[%s0 + $0x4c8] sm:$0xff]
  %v168 = vld [vmem:[%s0 + $0x4d0] sm:$0xff]
  %v169 = vld [vmem:[%s0 + $0x4d8] sm:$0xff]
  %v170 = vld [vmem:[%s0 + $0x4e0] sm:$0xff]
  %v171 = vld [vmem:[%s0 + $0x4e8] sm:$0xff]
  %v172 = vld [vmem:[%s0 + $0x4f0] sm:$0xff]
  %v173 = vld [vmem:[%s0 + $0x4f8] sm:$0xff]
  %v174 = vld [vmem:[%s0 + $0x500] sm:$0xff]
  %v175 = vld [vmem:[%s0 + $0x508] sm:$0xff]
  %v176 = vld [vmem:[%s0 + $0x510] sm:$0xff]
  %v177 = vld [vmem:[%s0 + $0x518] sm:$0xff]
  %v178 = vld [vmem:[%s0 + $0x520] sm:$0xff]
  %v179 = vld [vmem:[%s0 + $0x528] sm:$0xff]
  %v180 = vld [vmem:[%s0 + $0x530] sm:$0xff]
  %v181 = vld [vmem:[%s0 + $0x538] sm:$0xff]
  %v182 = vld [vmem:[%s0 + $0x540] sm:$0xff]
  %v183 = vld [vmem:[%s0 + $0x548] sm:$0xff]
  %v184 = vld [vmem:[%s0 + $0x550] sm:$0xff]
  %v185 = vld [vmem:[%s0 + $0x558] sm:$0xff]
  %v186 = vld [vmem:[%s0 + $0x560] sm:$0xff]
  %v187 = vld [vmem:[%s0 + $0x568] sm:$0xff]
  %v188 = vld [vmem:[%s0 + $0x570] sm:$0xff]
  %v189 = vld [vmem:[%s0 + $0x578] sm:$0xff]
  %v190 = vld [vmem:[%s0 + $0x580] sm:$0xff]
  %v191 = vld [vmem:[%s0 + $0x588] sm:$0xff]
  %v192 = vld [vmem:[%s0 + $0x590] sm:$0xff]
  %v193 = vld [vmem:[%s0 + $0x598] sm:$0xff]
  %v194 = vld [vmem:[%s0 + $0x5a0] sm:$0xff]
  %v195 = vld [vmem:[%s0 + $0x5a8] sm:$0xff]
  %v196 = vld [vmem:[%s0 + $0x5b0] sm:$0xff]
  %v197 = vld [vmem:[%s0 + $0x5b8] sm:$0xff]
  %v198 = vld [vmem:[%s0 + $0x5c0] sm:$0xff]
  %v199 = vld [vmem:[%s0 + $0x5c8] sm:$0xff]
  %v200 = vld [vmem:[%s0 + $0x5d0] sm:$0xff]
  %v201 = vld [vmem:[%s0 + $0x5d8] sm:$0xff]
  %v202 = vld [vmem:[%s0 + $0x5e0] sm:$0xff]
  %v203 = vld [vmem:[%s0 + $0x5e8] sm:$0xff]
  %v204 = vld [vmem:[%s0 + $0x5f0] sm:$0xff]
  %v205 = vld [vmem:[%s0 + $0x5f8] sm:$0xff]
  %v206 = vld [vmem:[%s0 + $0x600] sm:$0xff]
  %v207 = vld [vmem:[%s0 + $0x608] sm:$0xff]
  %v208 = vld [vmem:[%s0 + $0x610] sm:$0xff]
  %v209 = vld [vmem:[%s0 + $0x618] sm:$0xff]
  %v210 = vld [vmem:[%s0 + $0x620] sm:$0xff]
  %v211 = vld [vmem:[%s0 + $0x628] sm:$0xff]
  %v212 = vld [vmem:[%s0 + $0x630] sm:$0xff]
  %v213 = vld [vmem:[%s0 + $0x638] sm:$0xff]
  %v214 = vld [vmem:[%s0 + $0x640] sm:$0xff]
  %v215 = vld [vmem:[%s0 + $0x648] sm:$0xff]
  %v216 = vld [vmem:[%s0 + $0x650] sm:$0xff]
  %v217 = vld [vmem:[%s0 + $0x658] sm:$0xff]
  %v218 = vld [vmem:[%s0 + $0x660] sm:$0xff]
  %v219 = vld [vmem:[%s0 + $0x668] sm:$0xff]
  %v220 = vld [vmem:[%s0 + $0x670] sm:$0xff]
  %v221 = vld [vmem:[%s0 + $0x678] sm:$0xff]
  %v222 = vld [vmem:[%s1] sm:$0xff]
  %v223 = vld [vmem:[%s1 + $0x8] sm:$0xff]
  %v224 = vld [vmem:[%s1 + $0x10] sm:$0xff]
  %v225 = vld [vmem:[%s1 + $0x18] sm:$0xff]
  %v226 = vld [vmem:[%s1 + $0x20] sm:$0xf]
  %vm227 = vcmask 293888
  %v229 = vsel %vm227, %v14, 0
  %v232 = vsel %vm227, %v15, 0
  %v235 = vsel %vm227, %v16, 0
  %v238 = vsel %vm227, %v17, 0
  %v241 = vsel %vm227, %v18, 0
  %v244 = vsel %vm227, %v19, 0
  %v247 = vsel %vm227, %v20, 0
  %v250 = vsel %vm227, %v21, 0
  %v253 = vsel %vm227, %v22, 0
  %v256 = vsel %vm227, %v23, 0
  %v259 = vsel %vm227, %v24, 0
  %v262 = vsel %vm227, %v25, 0
  %v265 = vsel %vm227, %v26, 0
  %v268 = vsel %vm227, %v27, 0
  %v271 = vsel %vm227, %v28, 0
  %v274 = vsel %vm227, %v29, 0
  %v277 = vsel %vm227, %v30, 0
  %v280 = vsel %vm227, %v31, 0
  %v283 = vsel %vm227, %v32, 0
  %v286 = vsel %vm227, %v33, 0
  %v289 = vsel %vm227, %v34, 0
  %v292 = vsel %vm227, %v35, 0
  %v295 = vsel %vm227, %v36, 0
  %v298 = vsel %vm227, %v37, 0
  %v301 = vsel %vm227, %v38, 0
  %v304 = vsel %vm227, %v39, 0
  %v307 = vsel %vm227, %v40, 0
  %v310 = vsel %vm227, %v41, 0
  %v313 = vsel %vm227, %v42, 0
  %v316 = vsel %vm227, %v43, 0
  %v319 = vsel %vm227, %v44, 0
  %v322 = vsel %vm227, %v45, 0
  %v325 = vsel %vm227, %v46, 0
  %v328 = vsel %vm227, %v47, 0
  %v331 = vsel %vm227, %v48, 0
  %v334 = vsel %vm227, %v49, 0
  %v337 = vsel %vm227, %v50, 0
  %v340 = vsel %vm227, %v51, 0
  %v343 = vsel %vm227, %v52, 0
  %v346 = vsel %vm227, %v53, 0
  %v349 = vsel %vm227, %v54, 0
  %v352 = vsel %vm227, %v55, 0
  %v355 = vsel %vm227, %v56, 0
  %v358 = vsel %vm227, %v57, 0
  %v361 = vsel %vm227, %v58, 0
  %v364 = vsel %vm227, %v59, 0
  %v367 = vsel %vm227, %v60, 0
  %v370 = vsel %vm227, %v61, 0
  %v373 = vsel %vm227, %v62, 0
  %v376 = vsel %vm227, %v63, 0
  %v379 = vsel %vm227, %v64, 0
  %v382 = vsel %vm227, %v65, 0
  %v385 = vsel %vm227, %v66, 0
  %v388 = vsel %vm227, %v67, 0
  %v391 = vsel %vm227, %v68, 0
  %v394 = vsel %vm227, %v69, 0
  %v397 = vsel %vm227, %v70, 0
  %v400 = vsel %vm227, %v71, 0
  %v403 = vsel %vm227, %v72, 0
  %v406 = vsel %vm227, %v73, 0
  %v409 = vsel %vm227, %v74, 0
  %v412 = vsel %vm227, %v75, 0
  %v415 = vsel %vm227, %v76, 0
  %v418 = vsel %vm227, %v77, 0
  %v421 = vsel %vm227, %v78, 0
  %v424 = vsel %vm227, %v79, 0
  %v427 = vsel %vm227, %v80, 0
  %v430 = vsel %vm227, %v81, 0
  %v433 = vsel %vm227, %v82, 0
  %v436 = vsel %vm227, %v83, 0
  %v439 = vsel %vm227, %v84, 0
  %v442 = vsel %vm227, %v85, 0
  %v445 = vsel %vm227, %v86, 0
  %v448 = vsel %vm227, %v87, 0
  %v451 = vsel %vm227, %v88, 0
  %v454 = vsel %vm227, %v89, 0
  %v457 = vsel %vm227, %v90, 0
  %v460 = vsel %vm227, %v91, 0
  %v463 = vsel %vm227, %v92, 0
  %v466 = vsel %vm227, %v93, 0
  %v469 = vsel %vm227, %v94, 0
  %v472 = vsel %vm227, %v95, 0
  %v475 = vsel %vm227, %v96, 0
  %v478 = vsel %vm227, %v97, 0
  %v481 = vsel %vm227, %v98, 0
  %v484 = vsel %vm227, %v99, 0
  %v487 = vsel %vm227, %v100, 0
  %v490 = vsel %vm227, %v101, 0
  %v493 = vsel %vm227, %v102, 0
  %v496 = vsel %vm227, %v103, 0
  %v499 = vsel %vm227, %v104, 0
  %v502 = vsel %vm227, %v105, 0
  %v505 = vsel %vm227, %v106, 0
  %v508 = vsel %vm227, %v107, 0
  %v511 = vsel %vm227, %v108, 0
  %v514 = vsel %vm227, %v109, 0
  %v517 = vsel %vm227, %v110, 0
  %v520 = vsel %vm227, %v111, 0
  %v523 = vsel %vm227, %v112, 0
  %v526 = vsel %vm227, %v113, 0
  %v529 = vsel %vm227, %v114, 0
  %v532 = vsel %vm227, %v115, 0
  %v535 = vsel %vm227, %v116, 0
  %v538 = vsel %vm227, %v117, 0
  %v541 = vsel %vm227, %v118, 0
  %v544 = vsel %vm227, %v119, 0
  %v547 = vsel %vm227, %v120, 0
  %v550 = vsel %vm227, %v121, 0
  %v553 = vsel %vm227, %v122, 0
  %v556 = vsel %vm227, %v123, 0
  %v559 = vsel %vm227, %v124, 0
  %v562 = vsel %vm227, %v125, 0
  %v565 = vsel %vm227, %v126, 0
  %v568 = vsel %vm227, %v127, 0
  %v571 = vsel %vm227, %v128, 0
  %v574 = vsel %vm227, %v129, 0
  %v577 = vsel %vm227, %v130, 0
  %v580 = vsel %vm227, %v131, 0
  %v583 = vsel %vm227, %v132, 0
  %v586 = vsel %vm227, %v133, 0
  %v589 = vsel %vm227, %v134, 0
  %v592 = vsel %vm227, %v135, 0
  %v595 = vsel %vm227, %v136, 0
  %v598 = vsel %vm227, %v137, 0
  %v601 = vsel %vm227, %v138, 0
  %v604 = vsel %vm227, %v139, 0
  %v607 = vsel %vm227, %v140, 0
  %v610 = vsel %vm227, %v141, 0
  %v613 = vsel %vm227, %v142, 0
  %v616 = vsel %vm227, %v143, 0
  %v619 = vsel %vm227, %v144, 0
  %v622 = vsel %vm227, %v145, 0
  %v625 = vsel %vm227, %v146, 0
  %v628 = vsel %vm227, %v147, 0
  %v631 = vsel %vm227, %v148, 0
  %v634 = vsel %vm227, %v149, 0
  %v637 = vsel %vm227, %v150, 0
  %v640 = vsel %vm227, %v151, 0
  %v643 = vsel %vm227, %v152, 0
  %v646 = vsel %vm227, %v153, 0
  %v649 = vsel %vm227, %v154, 0
  %v652 = vsel %vm227, %v155, 0
  %v655 = vsel %vm227, %v156, 0
  %v658 = vsel %vm227, %v157, 0
  %v661 = vsel %vm227, %v158, 0
  %v664 = vsel %vm227, %v159, 0
  %v667 = vsel %vm227, %v160, 0
  %v670 = vsel %vm227, %v161, 0
  %v673 = vsel %vm227, %v162, 0
  %v676 = vsel %vm227, %v163, 0
  %v679 = vsel %vm227, %v164, 0
  %v682 = vsel %vm227, %v165, 0
  %v685 = vsel %vm227, %v166, 0
  %v688 = vsel %vm227, %v167, 0
  %v691 = vsel %vm227, %v168, 0
  %v694 = vsel %vm227, %v169, 0
  %v697 = vsel %vm227, %v170, 0
  %v700 = vsel %vm227, %v171, 0
  %v703 = vsel %vm227, %v172, 0
  %v706 = vsel %vm227, %v173, 0
  %v709 = vsel %vm227, %v174, 0
  %v712 = vsel %vm227, %v175, 0
  %v715 = vsel %vm227, %v176, 0
  %v718 = vsel %vm227, %v177, 0
  %v721 = vsel %vm227, %v178, 0
  %v724 = vsel %vm227, %v179, 0
  %v727 = vsel %vm227, %v180, 0
  %v730 = vsel %vm227, %v181, 0
  %v733 = vsel %vm227, %v182, 0
  %v736 = vsel %vm227, %v183, 0
  %v739 = vsel %vm227, %v184, 0
  %v742 = vsel %vm227, %v185, 0
  %v745 = vsel %vm227, %v186, 0
  %v748 = vsel %vm227, %v187, 0
  %v751 = vsel %vm227, %v188, 0
  %v754 = vsel %vm227, %v189, 0
  %v757 = vsel %vm227, %v190, 0
  %v760 = vsel %vm227, %v191, 0
  %v763 = vsel %vm227, %v192, 0
  %v766 = vsel %vm227, %v193, 0
  %v769 = vsel %vm227, %v194, 0
  %v772 = vsel %vm227, %v195, 0
  %v775 = vsel %vm227, %v196, 0
  %v778 = vsel %vm227, %v197, 0
  %v781 = vsel %vm227, %v198, 0
  %v784 = vsel %vm227, %v199, 0
  %v787 = vsel %vm227, %v200, 0
  %v790 = vsel %vm227, %v201, 0
  %v793 = vsel %vm227, %v202, 0
  %v796 = vsel %vm227, %v203, 0
  %v799 = vsel %vm227, %v204, 0
  %v802 = vsel %vm227, %v205, 0
  %v805 = vsel %vm227, %v206, 0
  %v808 = vsel %vm227, %v207, 0
  %v811 = vsel %vm227, %v208, 0
  %v814 = vsel %vm227, %v209, 0
  %v817 = vsel %vm227, %v210, 0
  %v820 = vsel %vm227, %v211, 0
  %v823 = vsel %vm227, %v212, 0
  %v826 = vsel %vm227, %v213, 0
  %v829 = vsel %vm227, %v214, 0
  %v832 = vsel %vm227, %v215, 0
  %v835 = vsel %vm227, %v216, 0
  %v838 = vsel %vm227, %v217, 0
  %v841 = vsel %vm227, %v218, 0
  %v844 = vsel %vm227, %v219, 0
  %v847 = vsel %vm227, %v220, 0
  %v850 = vsel %vm227, %v221, 0
  %vm852 = vcmask 1043456
  %v854 = vsel %vm852, %v226, 0
  %856 = vmatprep.subr.mxu0 0.0
  %857 = vmatpush1.msra.mxu0 0.0
  %858 = vmatprep.subr.mxu0 0.0
  %859 = vmatpush1.msra.mxu0 0.0
  %860 = vmatprep.subr.mxu0 0.0
  %861 = vmatpush1.msra.mxu0 0.0
  %862 = vmatprep.subr.mxu0 0.0
  %863 = vmatpush1.msra.mxu0 0.0
  %864 = vmatprep.subr.mxu0 0.0
  %865 = vmatpush1.msra.mxu0 0.0
  %866 = vmatprep.subr.mxu0 0.0
  %867 = vmatpush1.msra.mxu0 0.0
  %868 = vmatprep.subr.mxu0 0.0
  %869 = vmatpush1.msra.mxu0 0.0
  %870 = vmatprep.subr.mxu0 0.0
  %871 = vmatpush1.msra.mxu0 0.0
  %872 = vmatprep.subr.mxu0 0.0
  %873 = vmatpush1.msra.mxu0 0.0
  %874 = vmatprep.subr.mxu0 0.0
  %875 = vmatpush1.msra.mxu0 0.0
  %876 = vmatprep.subr.mxu0 0.0
  %877 = vmatpush1.msra.mxu0 0.0
  %878 = vmatprep.subr.mxu0 0.0
  %879 = vmatpush1.msra.mxu0 %v854
  %880 = vmatprep.subr.mxu0 0.0
  %881 = vmatpush1.msra.mxu0 %v225
  %882 = vmatprep.subr.mxu0 0.0
  %883 = vmatpush1.msra.mxu0 %v224
  %884 = vmatprep.subr.mxu0 0.0
  %885 = vmatpush1.msra.mxu0 %v223
  %886 = vmatprep.subr.mxu0 0.0
  %887 = vmatpush1.msra.mxu0 %v222
  %888 = vmatprep.subr.mxu0 0.0
  %889 = vmatpush2.msra.mxu0 0.0
  %890 = vmatprep.subr.mxu0 0.0
  %891 = vmatpush2.msra.mxu0 0.0
  %892 = vmatprep.subr.mxu0 0.0
  %893 = vmatpush2.msra.mxu0 0.0
  %894 = vmatprep.subr.mxu0 0.0
  %895 = vmatpush2.msra.mxu0 0.0
  %896 = vmatprep.subr.mxu0 0.0
  %897 = vmatpush2.msra.mxu0 0.0
  %898 = vmatprep.subr.mxu0 0.0
  %899 = vmatpush2.msra.mxu0 0.0
  %900 = vmatprep.subr.mxu0 0.0
  %901 = vmatpush2.msra.mxu0 0.0
  %902 = vmatprep.subr.mxu0 0.0
  %903 = vmatpush2.msra.mxu0 0.0
  %904 = vmatprep.subr.mxu0 0.0
  %905 = vmatpush2.msra.mxu0 0.0
  %906 = vmatprep.subr.mxu0 0.0
  %907 = vmatpush2.msra.mxu0 0.0
  %908 = vmatprep.subr.mxu0 0.0
  %909 = vmatpush2.msra.mxu0 0.0
  %910 = vmatprep.subr.mxu0 0.0
  %911 = vmatpush2.msra.mxu0 0.0
  %912 = vmatprep.subr.mxu0 0.0
  %913 = vmatpush2.msra.mxu0 0.0
  %914 = vmatprep.subr.mxu0 0.0
  %915 = vmatpush2.msra.mxu0 0.0
  %916 = vmatprep.subr.mxu0 0.0
  %917 = vmatpush2.msra.mxu0 0.0
  %918 = vmatprep.subr.mxu0 0.0
  %919 = vmatpush2.msra.mxu0 0.0
  %920 = vmatprep.mubr.f32.mxu0 0.0
  %921 = vmatmul.mubr.f32.gmra.mxu0 %v229
  %v922 = vpop.f32.mrf.mxu0
  %v923 = vadd.f32 0.0, %v922
  %v924 = vpop.f32.mrf.mxu0
  %925 = vmatprep.mubr.f32.mxu0 0.0
  %926 = vmatmul.mubr.f32.gmra.mxu0 %v232
  %v927 = vpop.f32.mrf.mxu0
  %v928 = vadd.f32 0.0, %v927
  %v929 = vpop.f32.mrf.mxu0
  %930 = vmatprep.mubr.f32.mxu0 0.0
  %931 = vmatmul.mubr.f32.gmra.mxu0 %v235
  %v932 = vpop.f32.mrf.mxu0
  %v933 = vadd.f32 0.0, %v932
  %v934 = vpop.f32.mrf.mxu0
  %935 = vmatprep.mubr.f32.mxu0 0.0
  %936 = vmatmul.mubr.f32.gmra.mxu0 %v238
  %v937 = vpop.f32.mrf.mxu0
  %v938 = vadd.f32 0.0, %v937
  %v939 = vpop.f32.mrf.mxu0
  %940 = vmatprep.mubr.f32.mxu0 0.0
  %941 = vmatmul.mubr.f32.gmra.mxu0 %v241
  %v942 = vpop.f32.mrf.mxu0
  %v943 = vadd.f32 0.0, %v942
  %v944 = vpop.f32.mrf.mxu0
  %945 = vmatprep.mubr.f32.mxu0 0.0
  %946 = vmatmul.mubr.f32.gmra.mxu0 %v244
  %v947 = vpop.f32.mrf.mxu0
  %v948 = vadd.f32 0.0, %v947
  %v949 = vpop.f32.mrf.mxu0
  %950 = vmatprep.mubr.f32.mxu0 0.0
  %951 = vmatmul.mubr.f32.gmra.mxu0 %v247
  %v952 = vpop.f32.mrf.mxu0
  %v953 = vadd.f32 0.0, %v952
  %v954 = vpop.f32.mrf.mxu0
  %955 = vmatprep.mubr.f32.mxu0 0.0
  %956 = vmatmul.mubr.f32.gmra.mxu0 %v250
  %v957 = vpop.f32.mrf.mxu0
  %v958 = vadd.f32 0.0, %v957
  %v959 = vpop.f32.mrf.mxu0
  %960 = vmatprep.mubr.f32.mxu0 0.0
  %961 = vmatmul.mubr.f32.gmra.mxu0 %v253
  %v962 = vpop.f32.mrf.mxu0
  %v963 = vadd.f32 0.0, %v962
  %v964 = vpop.f32.mrf.mxu0
  %965 = vmatprep.mubr.f32.mxu0 0.0
  %966 = vmatmul.mubr.f32.gmra.mxu0 %v256
  %v967 = vpop.f32.mrf.mxu0
  %v968 = vadd.f32 0.0, %v967
  %v969 = vpop.f32.mrf.mxu0
  %970 = vmatprep.mubr.f32.mxu0 0.0
  %971 = vmatmul.mubr.f32.gmra.mxu0 %v259
  %v972 = vpop.f32.mrf.mxu0
  %v973 = vadd.f32 0.0, %v972
  %v974 = vpop.f32.mrf.mxu0
  %975 = vmatprep.mubr.f32.mxu0 0.0
  %976 = vmatmul.mubr.f32.gmra.mxu0 %v262
  %v977 = vpop.f32.mrf.mxu0
  %v978 = vadd.f32 0.0, %v977
  %v979 = vpop.f32.mrf.mxu0
  %980 = vmatprep.mubr.f32.mxu0 0.0
  %981 = vmatmul.mubr.f32.gmra.mxu0 %v265
  %v982 = vpop.f32.mrf.mxu0
  %v983 = vadd.f32 0.0, %v982
  %v984 = vpop.f32.mrf.mxu0
  %985 = vmatprep.mubr.f32.mxu0 0.0
  %986 = vmatmul.mubr.f32.gmra.mxu0 %v268
  %v987 = vpop.f32.mrf.mxu0
  %v988 = vadd.f32 0.0, %v987
  %v989 = vpop.f32.mrf.mxu0
  %990 = vmatprep.mubr.f32.mxu0 0.0
  %991 = vmatmul.mubr.f32.gmra.mxu0 %v271
  %v992 = vpop.f32.mrf.mxu0
  %v993 = vadd.f32 0.0, %v992
  %v994 = vpop.f32.mrf.mxu0
  %995 = vmatprep.mubr.f32.mxu0 0.0
  %996 = vmatmul.mubr.f32.gmra.mxu0 %v274
  %v997 = vpop.f32.mrf.mxu0
  %v998 = vadd.f32 0.0, %v997
  %v999 = vpop.f32.mrf.mxu0
  %1000 = vmatprep.mubr.f32.mxu0 0.0
  %1001 = vmatmul.mubr.f32.gmra.mxu0 %v277
  %v1002 = vpop.f32.mrf.mxu0
  %v1003 = vadd.f32 0.0, %v1002
  %v1004 = vpop.f32.mrf.mxu0
  %1005 = vmatprep.mubr.f32.mxu0 0.0
  %1006 = vmatmul.mubr.f32.gmra.mxu0 %v280
  %v1007 = vpop.f32.mrf.mxu0
  %v1008 = vadd.f32 0.0, %v1007
  %v1009 = vpop.f32.mrf.mxu0
  %1010 = vmatprep.mubr.f32.mxu0 0.0
  %1011 = vmatmul.mubr.f32.gmra.mxu0 %v283
  %v1012 = vpop.f32.mrf.mxu0
  %v1013 = vadd.f32 0.0, %v1012
  %v1014 = vpop.f32.mrf.mxu0
  %1015 = vmatprep.mubr.f32.mxu0 0.0
  %1016 = vmatmul.mubr.f32.gmra.mxu0 %v286
  %v1017 = vpop.f32.mrf.mxu0
  %v1018 = vadd.f32 0.0, %v1017
  %v1019 = vpop.f32.mrf.mxu0
  %1020 = vmatprep.mubr.f32.mxu0 0.0
  %1021 = vmatmul.mubr.f32.gmra.mxu0 %v289
  %v1022 = vpop.f32.mrf.mxu0
  %v1023 = vadd.f32 0.0, %v1022
  %v1024 = vpop.f32.mrf.mxu0
  %1025 = vmatprep.mubr.f32.mxu0 0.0
  %1026 = vmatmul.mubr.f32.gmra.mxu0 %v292
  %v1027 = vpop.f32.mrf.mxu0
  %v1028 = vadd.f32 0.0, %v1027
  %v1029 = vpop.f32.mrf.mxu0
  %1030 = vmatprep.mubr.f32.mxu0 0.0
  %1031 = vmatmul.mubr.f32.gmra.mxu0 %v295
  %v1032 = vpop.f32.mrf.mxu0
  %v1033 = vadd.f32 0.0, %v1032
  %v1034 = vpop.f32.mrf.mxu0
  %1035 = vmatprep.mubr.f32.mxu0 0.0
  %1036 = vmatmul.mubr.f32.gmra.mxu0 %v298
  %v1037 = vpop.f32.mrf.mxu0
  %v1038 = vadd.f32 0.0, %v1037
  %v1039 = vpop.f32.mrf.mxu0
  %1040 = vmatprep.mubr.f32.mxu0 0.0
  %1041 = vmatmul.mubr.f32.gmra.mxu0 %v301
  %v1042 = vpop.f32.mrf.mxu0
  %v1043 = vadd.f32 0.0, %v1042
  %v1044 = vpop.f32.mrf.mxu0
  %1045 = vmatprep.mubr.f32.mxu0 0.0
  %1046 = vmatmul.mubr.f32.gmra.mxu0 %v304
  %v1047 = vpop.f32.mrf.mxu0
  %v1048 = vadd.f32 0.0, %v1047
  %v1049 = vpop.f32.mrf.mxu0
  %1050 = vmatprep.mubr.f32.mxu0 0.0
  %1051 = vmatmul.mubr.f32.gmra.mxu0 %v307
  %v1052 = vpop.f32.mrf.mxu0
  %v1053 = vadd.f32 0.0, %v1052
  %v1054 = vpop.f32.mrf.mxu0
  %1055 = vmatprep.mubr.f32.mxu0 0.0
  %1056 = vmatmul.mubr.f32.gmra.mxu0 %v310
  %v1057 = vpop.f32.mrf.mxu0
  %v1058 = vadd.f32 0.0, %v1057
  %v1059 = vpop.f32.mrf.mxu0
  %1060 = vmatprep.mubr.f32.mxu0 0.0
  %1061 = vmatmul.mubr.f32.gmra.mxu0 %v313
  %v1062 = vpop.f32.mrf.mxu0
  %v1063 = vadd.f32 0.0, %v1062
  %v1064 = vpop.f32.mrf.mxu0
  %1065 = vmatprep.mubr.f32.mxu0 0.0
  %1066 = vmatmul.mubr.f32.gmra.mxu0 %v316
  %v1067 = vpop.f32.mrf.mxu0
  %v1068 = vadd.f32 0.0, %v1067
  %v1069 = vpop.f32.mrf.mxu0
  %1070 = vmatprep.mubr.f32.mxu0 0.0
  %1071 = vmatmul.mubr.f32.gmra.mxu0 %v319
  %v1072 = vpop.f32.mrf.mxu0
  %v1073 = vadd.f32 0.0, %v1072
  %v1074 = vpop.f32.mrf.mxu0
  %1075 = vmatprep.mubr.f32.mxu0 0.0
  %1076 = vmatmul.mubr.f32.gmra.mxu0 %v322
  %v1077 = vpop.f32.mrf.mxu0
  %v1078 = vadd.f32 0.0, %v1077
  %v1079 = vpop.f32.mrf.mxu0
  %1080 = vmatprep.mubr.f32.mxu0 0.0
  %1081 = vmatmul.mubr.f32.gmra.mxu0 %v325
  %v1082 = vpop.f32.mrf.mxu0
  %v1083 = vadd.f32 0.0, %v1082
  %v1084 = vpop.f32.mrf.mxu0
  %1085 = vmatprep.mubr.f32.mxu0 0.0
  %1086 = vmatmul.mubr.f32.gmra.mxu0 %v328
  %v1087 = vpop.f32.mrf.mxu0
  %v1088 = vadd.f32 0.0, %v1087
  %v1089 = vpop.f32.mrf.mxu0
  %1090 = vmatprep.mubr.f32.mxu0 0.0
  %1091 = vmatmul.mubr.f32.gmra.mxu0 %v331
  %v1092 = vpop.f32.mrf.mxu0
  %v1093 = vadd.f32 0.0, %v1092
  %v1094 = vpop.f32.mrf.mxu0
  %1095 = vmatprep.mubr.f32.mxu0 0.0
  %1096 = vmatmul.mubr.f32.gmra.mxu0 %v334
  %v1097 = vpop.f32.mrf.mxu0
  %v1098 = vadd.f32 0.0, %v1097
  %v1099 = vpop.f32.mrf.mxu0
  %1100 = vmatprep.mubr.f32.mxu0 0.0
  %1101 = vmatmul.mubr.f32.gmra.mxu0 %v337
  %v1102 = vpop.f32.mrf.mxu0
  %v1103 = vadd.f32 0.0, %v1102
  %v1104 = vpop.f32.mrf.mxu0
  %1105 = vmatprep.mubr.f32.mxu0 0.0
  %1106 = vmatmul.mubr.f32.gmra.mxu0 %v340
  %v1107 = vpop.f32.mrf.mxu0
  %v1108 = vadd.f32 0.0, %v1107
  %v1109 = vpop.f32.mrf.mxu0
  %1110 = vmatprep.mubr.f32.mxu0 0.0
  %1111 = vmatmul.mubr.f32.gmra.mxu0 %v343
  %v1112 = vpop.f32.mrf.mxu0
  %v1113 = vadd.f32 0.0, %v1112
  %v1114 = vpop.f32.mrf.mxu0
  %1115 = vmatprep.mubr.f32.mxu0 0.0
  %1116 = vmatmul.mubr.f32.gmra.mxu0 %v346
  %v1117 = vpop.f32.mrf.mxu0
  %v1118 = vadd.f32 0.0, %v1117
  %v1119 = vpop.f32.mrf.mxu0
  %1120 = vmatprep.mubr.f32.mxu0 0.0
  %1121 = vmatmul.mubr.f32.gmra.mxu0 %v349
  %v1122 = vpop.f32.mrf.mxu0
  %v1123 = vadd.f32 0.0, %v1122
  %v1124 = vpop.f32.mrf.mxu0
  %1125 = vmatprep.mubr.f32.mxu0 0.0
  %1126 = vmatmul.mubr.f32.gmra.mxu0 %v352
  %v1127 = vpop.f32.mrf.mxu0
  %v1128 = vadd.f32 0.0, %v1127
  %v1129 = vpop.f32.mrf.mxu0
  %1130 = vmatprep.mubr.f32.mxu0 0.0
  %1131 = vmatmul.mubr.f32.gmra.mxu0 %v355
  %v1132 = vpop.f32.mrf.mxu0
  %v1133 = vadd.f32 0.0, %v1132
  %v1134 = vpop.f32.mrf.mxu0
  %1135 = vmatprep.mubr.f32.mxu0 0.0
  %1136 = vmatmul.mubr.f32.gmra.mxu0 %v358
  %v1137 = vpop.f32.mrf.mxu0
  %v1138 = vadd.f32 0.0, %v1137
  %v1139 = vpop.f32.mrf.mxu0
  %1140 = vmatprep.mubr.f32.mxu0 0.0
  %1141 = vmatmul.mubr.f32.gmra.mxu0 %v361
  %v1142 = vpop.f32.mrf.mxu0
  %v1143 = vadd.f32 0.0, %v1142
  %v1144 = vpop.f32.mrf.mxu0
  %1145 = vmatprep.mubr.f32.mxu0 0.0
  %1146 = vmatmul.mubr.f32.gmra.mxu0 %v364
  %v1147 = vpop.f32.mrf.mxu0
  %v1148 = vadd.f32 0.0, %v1147
  %v1149 = vpop.f32.mrf.mxu0
  %1150 = vmatprep.mubr.f32.mxu0 0.0
  %1151 = vmatmul.mubr.f32.gmra.mxu0 %v367
  %v1152 = vpop.f32.mrf.mxu0
  %v1153 = vadd.f32 0.0, %v1152
  %v1154 = vpop.f32.mrf.mxu0
  %1155 = vmatprep.mubr.f32.mxu0 0.0
  %1156 = vmatmul.mubr.f32.gmra.mxu0 %v370
  %v1157 = vpop.f32.mrf.mxu0
  %v1158 = vadd.f32 0.0, %v1157
  %v1159 = vpop.f32.mrf.mxu0
  %1160 = vmatprep.mubr.f32.mxu0 0.0
  %1161 = vmatmul.mubr.f32.gmra.mxu0 %v373
  %v1162 = vpop.f32.mrf.mxu0
  %v1163 = vadd.f32 0.0, %v1162
  %v1164 = vpop.f32.mrf.mxu0
  %1165 = vmatprep.mubr.f32.mxu0 0.0
  %1166 = vmatmul.mubr.f32.gmra.mxu0 %v376
  %v1167 = vpop.f32.mrf.mxu0
  %v1168 = vadd.f32 0.0, %v1167
  %v1169 = vpop.f32.mrf.mxu0
  %1170 = vmatprep.mubr.f32.mxu0 0.0
  %1171 = vmatmul.mubr.f32.gmra.mxu0 %v379
  %v1172 = vpop.f32.mrf.mxu0
  %v1173 = vadd.f32 0.0, %v1172
  %v1174 = vpop.f32.mrf.mxu0
  %1175 = vmatprep.mubr.f32.mxu0 0.0
  %1176 = vmatmul.mubr.f32.gmra.mxu0 %v382
  %v1177 = vpop.f32.mrf.mxu0
  %v1178 = vadd.f32 0.0, %v1177
  %v1179 = vpop.f32.mrf.mxu0
  %1180 = vmatprep.mubr.f32.mxu0 0.0
  %1181 = vmatmul.mubr.f32.gmra.mxu0 %v385
  %v1182 = vpop.f32.mrf.mxu0
  %v1183 = vadd.f32 0.0, %v1182
  %v1184 = vpop.f32.mrf.mxu0
  %1185 = vmatprep.mubr.f32.mxu0 0.0
  %1186 = vmatmul.mubr.f32.gmra.mxu0 %v388
  %v1187 = vpop.f32.mrf.mxu0
  %v1188 = vadd.f32 0.0, %v1187
  %v1189 = vpop.f32.mrf.mxu0
  %1190 = vmatprep.mubr.f32.mxu0 0.0
  %1191 = vmatmul.mubr.f32.gmra.mxu0 %v391
  %v1192 = vpop.f32.mrf.mxu0
  %v1193 = vadd.f32 0.0, %v1192
  %v1194 = vpop.f32.mrf.mxu0
  %1195 = vmatprep.mubr.f32.mxu0 0.0
  %1196 = vmatmul.mubr.f32.gmra.mxu0 %v394
  %v1197 = vpop.f32.mrf.mxu0
  %v1198 = vadd.f32 0.0, %v1197
  %v1199 = vpop.f32.mrf.mxu0
  %1200 = vmatprep.mubr.f32.mxu0 0.0
  %1201 = vmatmul.mubr.f32.gmra.mxu0 %v397
  %v1202 = vpop.f32.mrf.mxu0
  %v1203 = vadd.f32 0.0, %v1202
  %v1204 = vpop.f32.mrf.mxu0
  %1205 = vmatprep.mubr.f32.mxu0 0.0
  %1206 = vmatmul.mubr.f32.gmra.mxu0 %v400
  %v1207 = vpop.f32.mrf.mxu0
  %v1208 = vadd.f32 0.0, %v1207
  %v1209 = vpop.f32.mrf.mxu0
  %1210 = vmatprep.mubr.f32.mxu0 0.0
  %1211 = vmatmul.mubr.f32.gmra.mxu0 %v403
  %v1212 = vpop.f32.mrf.mxu0
  %v1213 = vadd.f32 0.0, %v1212
  %v1214 = vpop.f32.mrf.mxu0
  %1215 = vmatprep.mubr.f32.mxu0 0.0
  %1216 = vmatmul.mubr.f32.gmra.mxu0 %v406
  %v1217 = vpop.f32.mrf.mxu0
  %v1218 = vadd.f32 0.0, %v1217
  %v1219 = vpop.f32.mrf.mxu0
  %1220 = vmatprep.mubr.f32.mxu0 0.0
  %1221 = vmatmul.mubr.f32.gmra.mxu0 %v409
  %v1222 = vpop.f32.mrf.mxu0
  %v1223 = vadd.f32 0.0, %v1222
  %v1224 = vpop.f32.mrf.mxu0
  %1225 = vmatprep.mubr.f32.mxu0 0.0
  %1226 = vmatmul.mubr.f32.gmra.mxu0 %v412
  %v1227 = vpop.f32.mrf.mxu0
  %v1228 = vadd.f32 0.0, %v1227
  %v1229 = vpop.f32.mrf.mxu0
  %1230 = vmatprep.mubr.f32.mxu0 0.0
  %1231 = vmatmul.mubr.f32.gmra.mxu0 %v415
  %v1232 = vpop.f32.mrf.mxu0
  %v1233 = vadd.f32 0.0, %v1232
  %v1234 = vpop.f32.mrf.mxu0
  %1235 = vmatprep.mubr.f32.mxu0 0.0
  %1236 = vmatmul.mubr.f32.gmra.mxu0 %v418
  %v1237 = vpop.f32.mrf.mxu0
  %v1238 = vadd.f32 0.0, %v1237
  %v1239 = vpop.f32.mrf.mxu0
  %1240 = vmatprep.mubr.f32.mxu0 0.0
  %1241 = vmatmul.mubr.f32.gmra.mxu0 %v421
  %v1242 = vpop.f32.mrf.mxu0
  %v1243 = vadd.f32 0.0, %v1242
  %v1244 = vpop.f32.mrf.mxu0
  %1245 = vmatprep.mubr.f32.mxu0 0.0
  %1246 = vmatmul.mubr.f32.gmra.mxu0 %v424
  %v1247 = vpop.f32.mrf.mxu0
  %v1248 = vadd.f32 0.0, %v1247
  %v1249 = vpop.f32.mrf.mxu0
  %1250 = vmatprep.mubr.f32.mxu0 0.0
  %1251 = vmatmul.mubr.f32.gmra.mxu0 %v427
  %v1252 = vpop.f32.mrf.mxu0
  %v1253 = vadd.f32 0.0, %v1252
  %v1254 = vpop.f32.mrf.mxu0
  %1255 = vmatprep.mubr.f32.mxu0 0.0
  %1256 = vmatmul.mubr.f32.gmra.mxu0 %v430
  %v1257 = vpop.f32.mrf.mxu0
  %v1258 = vadd.f32 0.0, %v1257
  %v1259 = vpop.f32.mrf.mxu0
  %1260 = vmatprep.mubr.f32.mxu0 0.0
  %1261 = vmatmul.mubr.f32.gmra.mxu0 %v433
  %v1262 = vpop.f32.mrf.mxu0
  %v1263 = vadd.f32 0.0, %v1262
  %v1264 = vpop.f32.mrf.mxu0
  %1265 = vmatprep.mubr.f32.mxu0 0.0
  %1266 = vmatmul.mubr.f32.gmra.mxu0 %v436
  %v1267 = vpop.f32.mrf.mxu0
  %v1268 = vadd.f32 0.0, %v1267
  %v1269 = vpop.f32.mrf.mxu0
  %1270 = vmatprep.mubr.f32.mxu0 0.0
  %1271 = vmatmul.mubr.f32.gmra.mxu0 %v439
  %v1272 = vpop.f32.mrf.mxu0
  %v1273 = vadd.f32 0.0, %v1272
  %v1274 = vpop.f32.mrf.mxu0
  %1275 = vmatprep.mubr.f32.mxu0 0.0
  %1276 = vmatmul.mubr.f32.gmra.mxu0 %v442
  %v1277 = vpop.f32.mrf.mxu0
  %v1278 = vadd.f32 0.0, %v1277
  %v1279 = vpop.f32.mrf.mxu0
  %1280 = vmatprep.mubr.f32.mxu0 0.0
  %1281 = vmatmul.mubr.f32.gmra.mxu0 %v445
  %v1282 = vpop.f32.mrf.mxu0
  %v1283 = vadd.f32 0.0, %v1282
  %v1284 = vpop.f32.mrf.mxu0
  %1285 = vmatprep.mubr.f32.mxu0 0.0
  %1286 = vmatmul.mubr.f32.gmra.mxu0 %v448
  %v1287 = vpop.f32.mrf.mxu0
  %v1288 = vadd.f32 0.0, %v1287
  %v1289 = vpop.f32.mrf.mxu0
  %1290 = vmatprep.mubr.f32.mxu0 0.0
  %1291 = vmatmul.mubr.f32.gmra.mxu0 %v451
  %v1292 = vpop.f32.mrf.mxu0
  %v1293 = vadd.f32 0.0, %v1292
  %v1294 = vpop.f32.mrf.mxu0
  %1295 = vmatprep.mubr.f32.mxu0 0.0
  %1296 = vmatmul.mubr.f32.gmra.mxu0 %v454
  %v1297 = vpop.f32.mrf.mxu0
  %v1298 = vadd.f32 0.0, %v1297
  %v1299 = vpop.f32.mrf.mxu0
  %1300 = vmatprep.mubr.f32.mxu0 0.0
  %1301 = vmatmul.mubr.f32.gmra.mxu0 %v457
  %v1302 = vpop.f32.mrf.mxu0
  %v1303 = vadd.f32 0.0, %v1302
  %v1304 = vpop.f32.mrf.mxu0
  %1305 = vmatprep.mubr.f32.mxu0 0.0
  %1306 = vmatmul.mubr.f32.gmra.mxu0 %v460
  %v1307 = vpop.f32.mrf.mxu0
  %v1308 = vadd.f32 0.0, %v1307
  %v1309 = vpop.f32.mrf.mxu0
  %1310 = vmatprep.mubr.f32.mxu0 0.0
  %1311 = vmatmul.mubr.f32.gmra.mxu0 %v463
  %v1312 = vpop.f32.mrf.mxu0
  %v1313 = vadd.f32 0.0, %v1312
  %v1314 = vpop.f32.mrf.mxu0
  %1315 = vmatprep.mubr.f32.mxu0 0.0
  %1316 = vmatmul.mubr.f32.gmra.mxu0 %v466
  %v1317 = vpop.f32.mrf.mxu0
  %v1318 = vadd.f32 0.0, %v1317
  %v1319 = vpop.f32.mrf.mxu0
  %1320 = vmatprep.mubr.f32.mxu0 0.0
  %1321 = vmatmul.mubr.f32.gmra.mxu0 %v469
  %v1322 = vpop.f32.mrf.mxu0
  %v1323 = vadd.f32 0.0, %v1322
  %v1324 = vpop.f32.mrf.mxu0
  %1325 = vmatprep.mubr.f32.mxu0 0.0
  %1326 = vmatmul.mubr.f32.gmra.mxu0 %v472
  %v1327 = vpop.f32.mrf.mxu0
  %v1328 = vadd.f32 0.0, %v1327
  %v1329 = vpop.f32.mrf.mxu0
  %1330 = vmatprep.mubr.f32.mxu0 0.0
  %1331 = vmatmul.mubr.f32.gmra.mxu0 %v475
  %v1332 = vpop.f32.mrf.mxu0
  %v1333 = vadd.f32 0.0, %v1332
  %v1334 = vpop.f32.mrf.mxu0
  %1335 = vmatprep.mubr.f32.mxu0 0.0
  %1336 = vmatmul.mubr.f32.gmra.mxu0 %v478
  %v1337 = vpop.f32.mrf.mxu0
  %v1338 = vadd.f32 0.0, %v1337
  %v1339 = vpop.f32.mrf.mxu0
  %1340 = vmatprep.mubr.f32.mxu0 0.0
  %1341 = vmatmul.mubr.f32.gmra.mxu0 %v481
  %v1342 = vpop.f32.mrf.mxu0
  %v1343 = vadd.f32 0.0, %v1342
  %v1344 = vpop.f32.mrf.mxu0
  %1345 = vmatprep.mubr.f32.mxu0 0.0
  %1346 = vmatmul.mubr.f32.gmra.mxu0 %v484
  %v1347 = vpop.f32.mrf.mxu0
  %v1348 = vadd.f32 0.0, %v1347
  %v1349 = vpop.f32.mrf.mxu0
  %1350 = vmatprep.mubr.f32.mxu0 0.0
  %1351 = vmatmul.mubr.f32.gmra.mxu0 %v487
  %v1352 = vpop.f32.mrf.mxu0
  %v1353 = vadd.f32 0.0, %v1352
  %v1354 = vpop.f32.mrf.mxu0
  %1355 = vmatprep.mubr.f32.mxu0 0.0
  %1356 = vmatmul.mubr.f32.gmra.mxu0 %v490
  %v1357 = vpop.f32.mrf.mxu0
  %v1358 = vadd.f32 0.0, %v1357
  %v1359 = vpop.f32.mrf.mxu0
  %1360 = vmatprep.mubr.f32.mxu0 0.0
  %1361 = vmatmul.mubr.f32.gmra.mxu0 %v493
  %v1362 = vpop.f32.mrf.mxu0
  %v1363 = vadd.f32 0.0, %v1362
  %v1364 = vpop.f32.mrf.mxu0
  %1365 = vmatprep.mubr.f32.mxu0 0.0
  %1366 = vmatmul.mubr.f32.gmra.mxu0 %v496
  %v1367 = vpop.f32.mrf.mxu0
  %v1368 = vadd.f32 0.0, %v1367
  %v1369 = vpop.f32.mrf.mxu0
  %1370 = vmatprep.mubr.f32.mxu0 0.0
  %1371 = vmatmul.mubr.f32.gmra.mxu0 %v499
  %v1372 = vpop.f32.mrf.mxu0
  %v1373 = vadd.f32 0.0, %v1372
  %v1374 = vpop.f32.mrf.mxu0
  %1375 = vmatprep.mubr.f32.mxu0 0.0
  %1376 = vmatmul.mubr.f32.gmra.mxu0 %v502
  %v1377 = vpop.f32.mrf.mxu0
  %v1378 = vadd.f32 0.0, %v1377
  %v1379 = vpop.f32.mrf.mxu0
  %1380 = vmatprep.mubr.f32.mxu0 0.0
  %1381 = vmatmul.mubr.f32.gmra.mxu0 %v505
  %v1382 = vpop.f32.mrf.mxu0
  %v1383 = vadd.f32 0.0, %v1382
  %v1384 = vpop.f32.mrf.mxu0
  %1385 = vmatprep.mubr.f32.mxu0 0.0
  %1386 = vmatmul.mubr.f32.gmra.mxu0 %v508
  %v1387 = vpop.f32.mrf.mxu0
  %v1388 = vadd.f32 0.0, %v1387
  %v1389 = vpop.f32.mrf.mxu0
  %1390 = vmatprep.mubr.f32.mxu0 0.0
  %1391 = vmatmul.mubr.f32.gmra.mxu0 %v511
  %v1392 = vpop.f32.mrf.mxu0
  %v1393 = vadd.f32 0.0, %v1392
  %v1394 = vpop.f32.mrf.mxu0
  %1395 = vmatprep.mubr.f32.mxu0 0.0
  %1396 = vmatmul.mubr.f32.gmra.mxu0 %v514
  %v1397 = vpop.f32.mrf.mxu0
  %v1398 = vadd.f32 0.0, %v1397
  %v1399 = vpop.f32.mrf.mxu0
  %1400 = vmatprep.mubr.f32.mxu0 0.0
  %1401 = vmatmul.mubr.f32.gmra.mxu0 %v517
  %v1402 = vpop.f32.mrf.mxu0
  %v1403 = vadd.f32 0.0, %v1402
  %v1404 = vpop.f32.mrf.mxu0
  %1405 = vmatprep.mubr.f32.mxu0 0.0
  %1406 = vmatmul.mubr.f32.gmra.mxu0 %v520
  %v1407 = vpop.f32.mrf.mxu0
  %v1408 = vadd.f32 0.0, %v1407
  %v1409 = vpop.f32.mrf.mxu0
  %1410 = vmatprep.mubr.f32.mxu0 0.0
  %1411 = vmatmul.mubr.f32.gmra.mxu0 %v523
  %v1412 = vpop.f32.mrf.mxu0
  %v1413 = vadd.f32 0.0, %v1412
  %v1414 = vpop.f32.mrf.mxu0
  %1415 = vmatprep.mubr.f32.mxu0 0.0
  %1416 = vmatmul.mubr.f32.gmra.mxu0 %v526
  %v1417 = vpop.f32.mrf.mxu0
  %v1418 = vadd.f32 0.0, %v1417
  %v1419 = vpop.f32.mrf.mxu0
  %1420 = vmatprep.mubr.f32.mxu0 0.0
  %1421 = vmatmul.mubr.f32.gmra.mxu0 %v529
  %v1422 = vpop.f32.mrf.mxu0
  %v1423 = vadd.f32 0.0, %v1422
  %v1424 = vpop.f32.mrf.mxu0
  %1425 = vmatprep.mubr.f32.mxu0 0.0
  %1426 = vmatmul.mubr.f32.gmra.mxu0 %v532
  %v1427 = vpop.f32.mrf.mxu0
  %v1428 = vadd.f32 0.0, %v1427
  %v1429 = vpop.f32.mrf.mxu0
  %1430 = vmatprep.mubr.f32.mxu0 0.0
  %1431 = vmatmul.mubr.f32.gmra.mxu0 %v535
  %v1432 = vpop.f32.mrf.mxu0
  %v1433 = vadd.f32 0.0, %v1432
  %v1434 = vpop.f32.mrf.mxu0
  %1435 = vmatprep.mubr.f32.mxu0 0.0
  %1436 = vmatmul.mubr.f32.gmra.mxu0 %v538
  %v1437 = vpop.f32.mrf.mxu0
  %v1438 = vadd.f32 0.0, %v1437
  %v1439 = vpop.f32.mrf.mxu0
  %1440 = vmatprep.mubr.f32.mxu0 0.0
  %1441 = vmatmul.mubr.f32.gmra.mxu0 %v541
  %v1442 = vpop.f32.mrf.mxu0
  %v1443 = vadd.f32 0.0, %v1442
  %v1444 = vpop.f32.mrf.mxu0
  %1445 = vmatprep.mubr.f32.mxu0 0.0
  %1446 = vmatmul.mubr.f32.gmra.mxu0 %v544
  %v1447 = vpop.f32.mrf.mxu0
  %v1448 = vadd.f32 0.0, %v1447
  %v1449 = vpop.f32.mrf.mxu0
  %1450 = vmatprep.mubr.f32.mxu0 0.0
  %1451 = vmatmul.mubr.f32.gmra.mxu0 %v547
  %v1452 = vpop.f32.mrf.mxu0
  %v1453 = vadd.f32 0.0, %v1452
  %v1454 = vpop.f32.mrf.mxu0
  %1455 = vmatprep.mubr.f32.mxu0 0.0
  %1456 = vmatmul.mubr.f32.gmra.mxu0 %v550
  %v1457 = vpop.f32.mrf.mxu0
  %v1458 = vadd.f32 0.0, %v1457
  %v1459 = vpop.f32.mrf.mxu0
  %1460 = vmatprep.mubr.f32.mxu0 0.0
  %1461 = vmatmul.mubr.f32.gmra.mxu0 %v553
  %v1462 = vpop.f32.mrf.mxu0
  %v1463 = vadd.f32 0.0, %v1462
  %v1464 = vpop.f32.mrf.mxu0
  %1465 = vmatprep.mubr.f32.mxu0 0.0
  %1466 = vmatmul.mubr.f32.gmra.mxu0 %v556
  %v1467 = vpop.f32.mrf.mxu0
  %v1468 = vadd.f32 0.0, %v1467
  %v1469 = vpop.f32.mrf.mxu0
  %1470 = vmatprep.mubr.f32.mxu0 0.0
  %1471 = vmatmul.mubr.f32.gmra.mxu0 %v559
  %v1472 = vpop.f32.mrf.mxu0
  %v1473 = vadd.f32 0.0, %v1472
  %v1474 = vpop.f32.mrf.mxu0
  %1475 = vmatprep.mubr.f32.mxu0 0.0
  %1476 = vmatmul.mubr.f32.gmra.mxu0 %v562
  %v1477 = vpop.f32.mrf.mxu0
  %v1478 = vadd.f32 0.0, %v1477
  %v1479 = vpop.f32.mrf.mxu0
  %1480 = vmatprep.mubr.f32.mxu0 0.0
  %1481 = vmatmul.mubr.f32.gmra.mxu0 %v565
  %v1482 = vpop.f32.mrf.mxu0
  %v1483 = vadd.f32 0.0, %v1482
  %v1484 = vpop.f32.mrf.mxu0
  %1485 = vmatprep.mubr.f32.mxu0 0.0
  %1486 = vmatmul.mubr.f32.gmra.mxu0 %v568
  %v1487 = vpop.f32.mrf.mxu0
  %v1488 = vadd.f32 0.0, %v1487
  %v1489 = vpop.f32.mrf.mxu0
  %1490 = vmatprep.mubr.f32.mxu0 0.0
  %1491 = vmatmul.mubr.f32.gmra.mxu0 %v571
  %v1492 = vpop.f32.mrf.mxu0
  %v1493 = vadd.f32 0.0, %v1492
  %v1494 = vpop.f32.mrf.mxu0
  %1495 = vmatprep.mubr.f32.mxu0 0.0
  %1496 = vmatmul.mubr.f32.gmra.mxu0 %v574
  %v1497 = vpop.f32.mrf.mxu0
  %v1498 = vadd.f32 0.0, %v1497
  %v1499 = vpop.f32.mrf.mxu0
  %1500 = vmatprep.mubr.f32.mxu0 0.0
  %1501 = vmatmul.mubr.f32.gmra.mxu0 %v577
  %v1502 = vpop.f32.mrf.mxu0
  %v1503 = vadd.f32 0.0, %v1502
  %v1504 = vpop.f32.mrf.mxu0
  %1505 = vmatprep.mubr.f32.mxu0 0.0
  %1506 = vmatmul.mubr.f32.gmra.mxu0 %v580
  %v1507 = vpop.f32.mrf.mxu0
  %v1508 = vadd.f32 0.0, %v1507
  %v1509 = vpop.f32.mrf.mxu0
  %1510 = vmatprep.mubr.f32.mxu0 0.0
  %1511 = vmatmul.mubr.f32.gmra.mxu0 %v583
  %v1512 = vpop.f32.mrf.mxu0
  %v1513 = vadd.f32 0.0, %v1512
  %v1514 = vpop.f32.mrf.mxu0
  %1515 = vmatprep.mubr.f32.mxu0 0.0
  %1516 = vmatmul.mubr.f32.gmra.mxu0 %v586
  %v1517 = vpop.f32.mrf.mxu0
  %v1518 = vadd.f32 0.0, %v1517
  %v1519 = vpop.f32.mrf.mxu0
  %1520 = vmatprep.mubr.f32.mxu0 0.0
  %1521 = vmatmul.mubr.f32.gmra.mxu0 %v589
  %v1522 = vpop.f32.mrf.mxu0
  %v1523 = vadd.f32 0.0, %v1522
  %v1524 = vpop.f32.mrf.mxu0
  %1525 = vmatprep.mubr.f32.mxu0 0.0
  %1526 = vmatmul.mubr.f32.gmra.mxu0 %v592
  %v1527 = vpop.f32.mrf.mxu0
  %v1528 = vadd.f32 0.0, %v1527
  %v1529 = vpop.f32.mrf.mxu0
  %1530 = vmatprep.mubr.f32.mxu0 0.0
  %1531 = vmatmul.mubr.f32.gmra.mxu0 %v595
  %v1532 = vpop.f32.mrf.mxu0
  %v1533 = vadd.f32 0.0, %v1532
  %v1534 = vpop.f32.mrf.mxu0
  %1535 = vmatprep.mubr.f32.mxu0 0.0
  %1536 = vmatmul.mubr.f32.gmra.mxu0 %v598
  %v1537 = vpop.f32.mrf.mxu0
  %v1538 = vadd.f32 0.0, %v1537
  %v1539 = vpop.f32.mrf.mxu0
  %1540 = vmatprep.mubr.f32.mxu0 0.0
  %1541 = vmatmul.mubr.f32.gmra.mxu0 %v601
  %v1542 = vpop.f32.mrf.mxu0
  %v1543 = vadd.f32 0.0, %v1542
  %v1544 = vpop.f32.mrf.mxu0
  %1545 = vmatprep.mubr.f32.mxu0 0.0
  %1546 = vmatmul.mubr.f32.gmra.mxu0 %v604
  %v1547 = vpop.f32.mrf.mxu0
  %v1548 = vadd.f32 0.0, %v1547
  %v1549 = vpop.f32.mrf.mxu0
  %1550 = vmatprep.mubr.f32.mxu0 0.0
  %1551 = vmatmul.mubr.f32.gmra.mxu0 %v607
  %v1552 = vpop.f32.mrf.mxu0
  %v1553 = vadd.f32 0.0, %v1552
  %v1554 = vpop.f32.mrf.mxu0
  %1555 = vmatprep.mubr.f32.mxu0 0.0
  %1556 = vmatmul.mubr.f32.gmra.mxu0 %v610
  %v1557 = vpop.f32.mrf.mxu0
  %v1558 = vadd.f32 0.0, %v1557
  %v1559 = vpop.f32.mrf.mxu0
  %1560 = vmatprep.mubr.f32.mxu0 0.0
  %1561 = vmatmul.mubr.f32.gmra.mxu0 %v613
  %v1562 = vpop.f32.mrf.mxu0
  %v1563 = vadd.f32 0.0, %v1562
  %v1564 = vpop.f32.mrf.mxu0
  %1565 = vmatprep.mubr.f32.mxu0 0.0
  %1566 = vmatmul.mubr.f32.gmra.mxu0 %v616
  %v1567 = vpop.f32.mrf.mxu0
  %v1568 = vadd.f32 0.0, %v1567
  %v1569 = vpop.f32.mrf.mxu0
  %1570 = vmatprep.mubr.f32.mxu0 0.0
  %1571 = vmatmul.mubr.f32.gmra.mxu0 %v619
  %v1572 = vpop.f32.mrf.mxu0
  %v1573 = vadd.f32 0.0, %v1572
  %v1574 = vpop.f32.mrf.mxu0
  %1575 = vmatprep.mubr.f32.mxu0 0.0
  %1576 = vmatmul.mubr.f32.gmra.mxu0 %v622
  %v1577 = vpop.f32.mrf.mxu0
  %v1578 = vadd.f32 0.0, %v1577
  %v1579 = vpop.f32.mrf.mxu0
  %1580 = vmatprep.mubr.f32.mxu0 0.0
  %1581 = vmatmul.mubr.f32.gmra.mxu0 %v625
  %v1582 = vpop.f32.mrf.mxu0
  %v1583 = vadd.f32 0.0, %v1582
  %v1584 = vpop.f32.mrf.mxu0
  %1585 = vmatprep.mubr.f32.mxu0 0.0
  %1586 = vmatmul.mubr.f32.gmra.mxu0 %v628
  %v1587 = vpop.f32.mrf.mxu0
  %v1588 = vadd.f32 0.0, %v1587
  %v1589 = vpop.f32.mrf.mxu0
  %1590 = vmatprep.mubr.f32.mxu0 0.0
  %1591 = vmatmul.mubr.f32.gmra.mxu0 %v631
  %v1592 = vpop.f32.mrf.mxu0
  %v1593 = vadd.f32 0.0, %v1592
  %v1594 = vpop.f32.mrf.mxu0
  %1595 = vmatprep.mubr.f32.mxu0 0.0
  %1596 = vmatmul.mubr.f32.gmra.mxu0 %v634
  %v1597 = vpop.f32.mrf.mxu0
  %v1598 = vadd.f32 0.0, %v1597
  %v1599 = vpop.f32.mrf.mxu0
  %1600 = vmatprep.mubr.f32.mxu0 0.0
  %1601 = vmatmul.mubr.f32.gmra.mxu0 %v637
  %v1602 = vpop.f32.mrf.mxu0
  %v1603 = vadd.f32 0.0, %v1602
  %v1604 = vpop.f32.mrf.mxu0
  %1605 = vmatprep.mubr.f32.mxu0 0.0
  %1606 = vmatmul.mubr.f32.gmra.mxu0 %v640
  %v1607 = vpop.f32.mrf.mxu0
  %v1608 = vadd.f32 0.0, %v1607
  %v1609 = vpop.f32.mrf.mxu0
  %1610 = vmatprep.mubr.f32.mxu0 0.0
  %1611 = vmatmul.mubr.f32.gmra.mxu0 %v643
  %v1612 = vpop.f32.mrf.mxu0
  %v1613 = vadd.f32 0.0, %v1612
  %v1614 = vpop.f32.mrf.mxu0
  %1615 = vmatprep.mubr.f32.mxu0 0.0
  %1616 = vmatmul.mubr.f32.gmra.mxu0 %v646
  %v1617 = vpop.f32.mrf.mxu0
  %v1618 = vadd.f32 0.0, %v1617
  %v1619 = vpop.f32.mrf.mxu0
  %1620 = vmatprep.mubr.f32.mxu0 0.0
  %1621 = vmatmul.mubr.f32.gmra.mxu0 %v649
  %v1622 = vpop.f32.mrf.mxu0
  %v1623 = vadd.f32 0.0, %v1622
  %v1624 = vpop.f32.mrf.mxu0
  %1625 = vmatprep.mubr.f32.mxu0 0.0
  %1626 = vmatmul.mubr.f32.gmra.mxu0 %v652
  %v1627 = vpop.f32.mrf.mxu0
  %v1628 = vadd.f32 0.0, %v1627
  %v1629 = vpop.f32.mrf.mxu0
  %1630 = vmatprep.mubr.f32.mxu0 0.0
  %1631 = vmatmul.mubr.f32.gmra.mxu0 %v655
  %v1632 = vpop.f32.mrf.mxu0
  %v1633 = vadd.f32 0.0, %v1632
  %v1634 = vpop.f32.mrf.mxu0
  %1635 = vmatprep.mubr.f32.mxu0 0.0
  %1636 = vmatmul.mubr.f32.gmra.mxu0 %v658
  %v1637 = vpop.f32.mrf.mxu0
  %v1638 = vadd.f32 0.0, %v1637
  %v1639 = vpop.f32.mrf.mxu0
  %1640 = vmatprep.mubr.f32.mxu0 0.0
  %1641 = vmatmul.mubr.f32.gmra.mxu0 %v661
  %v1642 = vpop.f32.mrf.mxu0
  %v1643 = vadd.f32 0.0, %v1642
  %v1644 = vpop.f32.mrf.mxu0
  %1645 = vmatprep.mubr.f32.mxu0 0.0
  %1646 = vmatmul.mubr.f32.gmra.mxu0 %v664
  %v1647 = vpop.f32.mrf.mxu0
  %v1648 = vadd.f32 0.0, %v1647
  %v1649 = vpop.f32.mrf.mxu0
  %1650 = vmatprep.mubr.f32.mxu0 0.0
  %1651 = vmatmul.mubr.f32.gmra.mxu0 %v667
  %v1652 = vpop.f32.mrf.mxu0
  %v1653 = vadd.f32 0.0, %v1652
  %v1654 = vpop.f32.mrf.mxu0
  %1655 = vmatprep.mubr.f32.mxu0 0.0
  %1656 = vmatmul.mubr.f32.gmra.mxu0 %v670
  %v1657 = vpop.f32.mrf.mxu0
  %v1658 = vadd.f32 0.0, %v1657
  %v1659 = vpop.f32.mrf.mxu0
  %1660 = vmatprep.mubr.f32.mxu0 0.0
  %1661 = vmatmul.mubr.f32.gmra.mxu0 %v673
  %v1662 = vpop.f32.mrf.mxu0
  %v1663 = vadd.f32 0.0, %v1662
  %v1664 = vpop.f32.mrf.mxu0
  %1665 = vmatprep.mubr.f32.mxu0 0.0
  %1666 = vmatmul.mubr.f32.gmra.mxu0 %v676
  %v1667 = vpop.f32.mrf.mxu0
  %v1668 = vadd.f32 0.0, %v1667
  %v1669 = vpop.f32.mrf.mxu0
  %1670 = vmatprep.mubr.f32.mxu0 0.0
  %1671 = vmatmul.mubr.f32.gmra.mxu0 %v679
  %v1672 = vpop.f32.mrf.mxu0
  %v1673 = vadd.f32 0.0, %v1672
  %v1674 = vpop.f32.mrf.mxu0
  %1675 = vmatprep.mubr.f32.mxu0 0.0
  %1676 = vmatmul.mubr.f32.gmra.mxu0 %v682
  %v1677 = vpop.f32.mrf.mxu0
  %v1678 = vadd.f32 0.0, %v1677
  %v1679 = vpop.f32.mrf.mxu0
  %1680 = vmatprep.mubr.f32.mxu0 0.0
  %1681 = vmatmul.mubr.f32.gmra.mxu0 %v685
  %v1682 = vpop.f32.mrf.mxu0
  %v1683 = vadd.f32 0.0, %v1682
  %v1684 = vpop.f32.mrf.mxu0
  %1685 = vmatprep.mubr.f32.mxu0 0.0
  %1686 = vmatmul.mubr.f32.gmra.mxu0 %v688
  %v1687 = vpop.f32.mrf.mxu0
  %v1688 = vadd.f32 0.0, %v1687
  %v1689 = vpop.f32.mrf.mxu0
  %1690 = vmatprep.mubr.f32.mxu0 0.0
  %1691 = vmatmul.mubr.f32.gmra.mxu0 %v691
  %v1692 = vpop.f32.mrf.mxu0
  %v1693 = vadd.f32 0.0, %v1692
  %v1694 = vpop.f32.mrf.mxu0
  %1695 = vmatprep.mubr.f32.mxu0 0.0
  %1696 = vmatmul.mubr.f32.gmra.mxu0 %v694
  %v1697 = vpop.f32.mrf.mxu0
  %v1698 = vadd.f32 0.0, %v1697
  %v1699 = vpop.f32.mrf.mxu0
  %1700 = vmatprep.mubr.f32.mxu0 0.0
  %1701 = vmatmul.mubr.f32.gmra.mxu0 %v697
  %v1702 = vpop.f32.mrf.mxu0
  %v1703 = vadd.f32 0.0, %v1702
  %v1704 = vpop.f32.mrf.mxu0
  %1705 = vmatprep.mubr.f32.mxu0 0.0
  %1706 = vmatmul.mubr.f32.gmra.mxu0 %v700
  %v1707 = vpop.f32.mrf.mxu0
  %v1708 = vadd.f32 0.0, %v1707
  %v1709 = vpop.f32.mrf.mxu0
  %1710 = vmatprep.mubr.f32.mxu0 0.0
  %1711 = vmatmul.mubr.f32.gmra.mxu0 %v703
  %v1712 = vpop.f32.mrf.mxu0
  %v1713 = vadd.f32 0.0, %v1712
  %v1714 = vpop.f32.mrf.mxu0
  %1715 = vmatprep.mubr.f32.mxu0 0.0
  %1716 = vmatmul.mubr.f32.gmra.mxu0 %v706
  %v1717 = vpop.f32.mrf.mxu0
  %v1718 = vadd.f32 0.0, %v1717
  %v1719 = vpop.f32.mrf.mxu0
  %1720 = vmatprep.mubr.f32.mxu0 0.0
  %1721 = vmatmul.mubr.f32.gmra.mxu0 %v709
  %v1722 = vpop.f32.mrf.mxu0
  %v1723 = vadd.f32 0.0, %v1722
  %v1724 = vpop.f32.mrf.mxu0
  %1725 = vmatprep.mubr.f32.mxu0 0.0
  %1726 = vmatmul.mubr.f32.gmra.mxu0 %v712
  %v1727 = vpop.f32.mrf.mxu0
  %v1728 = vadd.f32 0.0, %v1727
  %v1729 = vpop.f32.mrf.mxu0
  %1730 = vmatprep.mubr.f32.mxu0 0.0
  %1731 = vmatmul.mubr.f32.gmra.mxu0 %v715
  %v1732 = vpop.f32.mrf.mxu0
  %v1733 = vadd.f32 0.0, %v1732
  %v1734 = vpop.f32.mrf.mxu0
  %1735 = vmatprep.mubr.f32.mxu0 0.0
  %1736 = vmatmul.mubr.f32.gmra.mxu0 %v718
  %v1737 = vpop.f32.mrf.mxu0
  %v1738 = vadd.f32 0.0, %v1737
  %v1739 = vpop.f32.mrf.mxu0
  %1740 = vmatprep.mubr.f32.mxu0 0.0
  %1741 = vmatmul.mubr.f32.gmra.mxu0 %v721
  %v1742 = vpop.f32.mrf.mxu0
  %v1743 = vadd.f32 0.0, %v1742
  %v1744 = vpop.f32.mrf.mxu0
  %1745 = vmatprep.mubr.f32.mxu0 0.0
  %1746 = vmatmul.mubr.f32.gmra.mxu0 %v724
  %v1747 = vpop.f32.mrf.mxu0
  %v1748 = vadd.f32 0.0, %v1747
  %v1749 = vpop.f32.mrf.mxu0
  %1750 = vmatprep.mubr.f32.mxu0 0.0
  %1751 = vmatmul.mubr.f32.gmra.mxu0 %v727
  %v1752 = vpop.f32.mrf.mxu0
  %v1753 = vadd.f32 0.0, %v1752
  %v1754 = vpop.f32.mrf.mxu0
  %1755 = vmatprep.mubr.f32.mxu0 0.0
  %1756 = vmatmul.mubr.f32.gmra.mxu0 %v730
  %v1757 = vpop.f32.mrf.mxu0
  %v1758 = vadd.f32 0.0, %v1757
  %v1759 = vpop.f32.mrf.mxu0
  %1760 = vmatprep.mubr.f32.mxu0 0.0
  %1761 = vmatmul.mubr.f32.gmra.mxu0 %v733
  %v1762 = vpop.f32.mrf.mxu0
  %v1763 = vadd.f32 0.0, %v1762
  %v1764 = vpop.f32.mrf.mxu0
  %1765 = vmatprep.mubr.f32.mxu0 0.0
  %1766 = vmatmul.mubr.f32.gmra.mxu0 %v736
  %v1767 = vpop.f32.mrf.mxu0
  %v1768 = vadd.f32 0.0, %v1767
  %v1769 = vpop.f32.mrf.mxu0
  %1770 = vmatprep.mubr.f32.mxu0 0.0
  %1771 = vmatmul.mubr.f32.gmra.mxu0 %v739
  %v1772 = vpop.f32.mrf.mxu0
  %v1773 = vadd.f32 0.0, %v1772
  %v1774 = vpop.f32.mrf.mxu0
  %1775 = vmatprep.mubr.f32.mxu0 0.0
  %1776 = vmatmul.mubr.f32.gmra.mxu0 %v742
  %v1777 = vpop.f32.mrf.mxu0
  %v1778 = vadd.f32 0.0, %v1777
  %v1779 = vpop.f32.mrf.mxu0
  %1780 = vmatprep.mubr.f32.mxu0 0.0
  %1781 = vmatmul.mubr.f32.gmra.mxu0 %v745
  %v1782 = vpop.f32.mrf.mxu0
  %v1783 = vadd.f32 0.0, %v1782
  %v1784 = vpop.f32.mrf.mxu0
  %1785 = vmatprep.mubr.f32.mxu0 0.0
  %1786 = vmatmul.mubr.f32.gmra.mxu0 %v748
  %v1787 = vpop.f32.mrf.mxu0
  %v1788 = vadd.f32 0.0, %v1787
  %v1789 = vpop.f32.mrf.mxu0
  %1790 = vmatprep.mubr.f32.mxu0 0.0
  %1791 = vmatmul.mubr.f32.gmra.mxu0 %v751
  %v1792 = vpop.f32.mrf.mxu0
  %v1793 = vadd.f32 0.0, %v1792
  %v1794 = vpop.f32.mrf.mxu0
  %1795 = vmatprep.mubr.f32.mxu0 0.0
  %1796 = vmatmul.mubr.f32.gmra.mxu0 %v754
  %v1797 = vpop.f32.mrf.mxu0
  %v1798 = vadd.f32 0.0, %v1797
  %v1799 = vpop.f32.mrf.mxu0
  %1800 = vmatprep.mubr.f32.mxu0 0.0
  %1801 = vmatmul.mubr.f32.gmra.mxu0 %v757
  %v1802 = vpop.f32.mrf.mxu0
  %v1803 = vadd.f32 0.0, %v1802
  %v1804 = vpop.f32.mrf.mxu0
  %1805 = vmatprep.mubr.f32.mxu0 0.0
  %1806 = vmatmul.mubr.f32.gmra.mxu0 %v760
  %v1807 = vpop.f32.mrf.mxu0
  %v1808 = vadd.f32 0.0, %v1807
  %v1809 = vpop.f32.mrf.mxu0
  %1810 = vmatprep.mubr.f32.mxu0 0.0
  %1811 = vmatmul.mubr.f32.gmra.mxu0 %v763
  %v1812 = vpop.f32.mrf.mxu0
  %v1813 = vadd.f32 0.0, %v1812
  %v1814 = vpop.f32.mrf.mxu0
  %1815 = vmatprep.mubr.f32.mxu0 0.0
  %1816 = vmatmul.mubr.f32.gmra.mxu0 %v766
  %v1817 = vpop.f32.mrf.mxu0
  %v1818 = vadd.f32 0.0, %v1817
  %v1819 = vpop.f32.mrf.mxu0
  %1820 = vmatprep.mubr.f32.mxu0 0.0
  %1821 = vmatmul.mubr.f32.gmra.mxu0 %v769
  %v1822 = vpop.f32.mrf.mxu0
  %v1823 = vadd.f32 0.0, %v1822
  %v1824 = vpop.f32.mrf.mxu0
  %1825 = vmatprep.mubr.f32.mxu0 0.0
  %1826 = vmatmul.mubr.f32.gmra.mxu0 %v772
  %v1827 = vpop.f32.mrf.mxu0
  %v1828 = vadd.f32 0.0, %v1827
  %v1829 = vpop.f32.mrf.mxu0
  %1830 = vmatprep.mubr.f32.mxu0 0.0
  %1831 = vmatmul.mubr.f32.gmra.mxu0 %v775
  %v1832 = vpop.f32.mrf.mxu0
  %v1833 = vadd.f32 0.0, %v1832
  %v1834 = vpop.f32.mrf.mxu0
  %1835 = vmatprep.mubr.f32.mxu0 0.0
  %1836 = vmatmul.mubr.f32.gmra.mxu0 %v778
  %v1837 = vpop.f32.mrf.mxu0
  %v1838 = vadd.f32 0.0, %v1837
  %v1839 = vpop.f32.mrf.mxu0
  %1840 = vmatprep.mubr.f32.mxu0 0.0
  %1841 = vmatmul.mubr.f32.gmra.mxu0 %v781
  %v1842 = vpop.f32.mrf.mxu0
  %v1843 = vadd.f32 0.0, %v1842
  %v1844 = vpop.f32.mrf.mxu0
  %1845 = vmatprep.mubr.f32.mxu0 0.0
  %1846 = vmatmul.mubr.f32.gmra.mxu0 %v784
  %v1847 = vpop.f32.mrf.mxu0
  %v1848 = vadd.f32 0.0, %v1847
  %v1849 = vpop.f32.mrf.mxu0
  %1850 = vmatprep.mubr.f32.mxu0 0.0
  %1851 = vmatmul.mubr.f32.gmra.mxu0 %v787
  %v1852 = vpop.f32.mrf.mxu0
  %v1853 = vadd.f32 0.0, %v1852
  %v1854 = vpop.f32.mrf.mxu0
  %1855 = vmatprep.mubr.f32.mxu0 0.0
  %1856 = vmatmul.mubr.f32.gmra.mxu0 %v790
  %v1857 = vpop.f32.mrf.mxu0
  %v1858 = vadd.f32 0.0, %v1857
  %v1859 = vpop.f32.mrf.mxu0
  %1860 = vmatprep.mubr.f32.mxu0 0.0
  %1861 = vmatmul.mubr.f32.gmra.mxu0 %v793
  %v1862 = vpop.f32.mrf.mxu0
  %v1863 = vadd.f32 0.0, %v1862
  %v1864 = vpop.f32.mrf.mxu0
  %1865 = vmatprep.mubr.f32.mxu0 0.0
  %1866 = vmatmul.mubr.f32.gmra.mxu0 %v796
  %v1867 = vpop.f32.mrf.mxu0
  %v1868 = vadd.f32 0.0, %v1867
  %v1869 = vpop.f32.mrf.mxu0
  %1870 = vmatprep.mubr.f32.mxu0 0.0
  %1871 = vmatmul.mubr.f32.gmra.mxu0 %v799
  %v1872 = vpop.f32.mrf.mxu0
  %v1873 = vadd.f32 0.0, %v1872
  %v1874 = vpop.f32.mrf.mxu0
  %1875 = vmatprep.mubr.f32.mxu0 0.0
  %1876 = vmatmul.mubr.f32.gmra.mxu0 %v802
  %v1877 = vpop.f32.mrf.mxu0
  %v1878 = vadd.f32 0.0, %v1877
  %v1879 = vpop.f32.mrf.mxu0
  %1880 = vmatprep.mubr.f32.mxu0 0.0
  %1881 = vmatmul.mubr.f32.gmra.mxu0 %v805
  %v1882 = vpop.f32.mrf.mxu0
  %v1883 = vadd.f32 0.0, %v1882
  %v1884 = vpop.f32.mrf.mxu0
  %1885 = vmatprep.mubr.f32.mxu0 0.0
  %1886 = vmatmul.mubr.f32.gmra.mxu0 %v808
  %v1887 = vpop.f32.mrf.mxu0
  %v1888 = vadd.f32 0.0, %v1887
  %v1889 = vpop.f32.mrf.mxu0
  %1890 = vmatprep.mubr.f32.mxu0 0.0
  %1891 = vmatmul.mubr.f32.gmra.mxu0 %v811
  %v1892 = vpop.f32.mrf.mxu0
  %v1893 = vadd.f32 0.0, %v1892
  %v1894 = vpop.f32.mrf.mxu0
  %1895 = vmatprep.mubr.f32.mxu0 0.0
  %1896 = vmatmul.mubr.f32.gmra.mxu0 %v814
  %v1897 = vpop.f32.mrf.mxu0
  %v1898 = vadd.f32 0.0, %v1897
  %v1899 = vpop.f32.mrf.mxu0
  %1900 = vmatprep.mubr.f32.mxu0 0.0
  %1901 = vmatmul.mubr.f32.gmra.mxu0 %v817
  %v1902 = vpop.f32.mrf.mxu0
  %v1903 = vadd.f32 0.0, %v1902
  %v1904 = vpop.f32.mrf.mxu0
  %1905 = vmatprep.mubr.f32.mxu0 0.0
  %1906 = vmatmul.mubr.f32.gmra.mxu0 %v820
  %v1907 = vpop.f32.mrf.mxu0
  %v1908 = vadd.f32 0.0, %v1907
  %v1909 = vpop.f32.mrf.mxu0
  %1910 = vmatprep.mubr.f32.mxu0 0.0
  %1911 = vmatmul.mubr.f32.gmra.mxu0 %v823
  %v1912 = vpop.f32.mrf.mxu0
  %v1913 = vadd.f32 0.0, %v1912
  %v1914 = vpop.f32.mrf.mxu0
  %1915 = vmatprep.mubr.f32.mxu0 0.0
  %1916 = vmatmul.mubr.f32.gmra.mxu0 %v826
  %v1917 = vpop.f32.mrf.mxu0
  %v1918 = vadd.f32 0.0, %v1917
  %v1919 = vpop.f32.mrf.mxu0
  %1920 = vmatprep.mubr.f32.mxu0 0.0
  %1921 = vmatmul.mubr.f32.gmra.mxu0 %v829
  %v1922 = vpop.f32.mrf.mxu0
  %v1923 = vadd.f32 0.0, %v1922
  %v1924 = vpop.f32.mrf.mxu0
  %1925 = vmatprep.mubr.f32.mxu0 0.0
  %1926 = vmatmul.mubr.f32.gmra.mxu0 %v832
  %v1927 = vpop.f32.mrf.mxu0
  %v1928 = vadd.f32 0.0, %v1927
  %v1929 = vpop.f32.mrf.mxu0
  %1930 = vmatprep.mubr.f32.mxu0 0.0
  %1931 = vmatmul.mubr.f32.gmra.mxu0 %v835
  %v1932 = vpop.f32.mrf.mxu0
  %v1933 = vadd.f32 0.0, %v1932
  %v1934 = vpop.f32.mrf.mxu0
  %1935 = vmatprep.mubr.f32.mxu0 0.0
  %1936 = vmatmul.mubr.f32.gmra.mxu0 %v838
  %v1937 = vpop.f32.mrf.mxu0
  %v1938 = vadd.f32 0.0, %v1937
  %v1939 = vpop.f32.mrf.mxu0
  %1940 = vmatprep.mubr.f32.mxu0 0.0
  %1941 = vmatmul.mubr.f32.gmra.mxu0 %v841
  %v1942 = vpop.f32.mrf.mxu0
  %v1943 = vadd.f32 0.0, %v1942
  %v1944 = vpop.f32.mrf.mxu0
  %1945 = vmatprep.mubr.f32.mxu0 0.0
  %1946 = vmatmul.mubr.f32.gmra.mxu0 %v844
  %v1947 = vpop.f32.mrf.mxu0
  %v1948 = vadd.f32 0.0, %v1947
  %v1949 = vpop.f32.mrf.mxu0
  %1950 = vmatprep.mubr.f32.mxu0 0.0
  %1951 = vmatmul.mubr.f32.gmra.mxu0 %v847
  %v1952 = vpop.f32.mrf.mxu0
  %v1953 = vadd.f32 0.0, %v1952
  %v1954 = vpop.f32.mrf.mxu0
  %1955 = vmatprep.mubr.f32.mxu0 0.0
  %1956 = vmatmul.mubr.f32.gmra.mxu0 %v850
  %v1957 = vpop.f32.mrf.mxu0
  %v1958 = vadd.f32 0.0, %v1957
  %v1959 = vpop.f32.mrf.mxu0
  %1960 = vdwg.mxu0
  %v1961 = vmax.f32 %v923, %v988
  %v1962 = vmax.f32 %v928, %v993
  %v1963 = vmax.f32 %v933, %v998
  %v1964 = vmax.f32 %v938, %v1003
  %v1965 = vmax.f32 %v943, %v1008
  %v1966 = vmax.f32 %v948, %v1013
  %v1967 = vmax.f32 %v953, %v1018
  %v1968 = vmax.f32 %v958, %v1023
  %v1969 = vmax.f32 %v963, %v1028
  %v1970 = vmax.f32 %v968, %v1033
  %v1971 = vmax.f32 %v973, %v1038
  %v1972 = vmax.f32 %v978, %v1043
  %v1973 = vmax.f32 %v983, %v1048
  %v1974 = vmax.f32 %v1961, %v1053
  %v1975 = vmax.f32 %v1962, %v1058
  %v1976 = vmax.f32 %v1963, %v1063
  %v1977 = vmax.f32 %v1964, %v1068
  %v1978 = vmax.f32 %v1965, %v1073
  %v1979 = vmax.f32 %v1966, %v1078
  %v1980 = vmax.f32 %v1967, %v1083
  %v1981 = vmax.f32 %v1968, %v1088
  %v1982 = vmax.f32 %v1969, %v1093
  %v1983 = vmax.f32 %v1970, %v1098
  %v1984 = vmax.f32 %v1971, %v1103
  %v1985 = vmax.f32 %v1972, %v1108
  %v1986 = vmax.f32 %v1973, %v1113
  %v1987 = vmax.f32 %v1974, %v1118
  %v1988 = vmax.f32 %v1975, %v1123
  %v1989 = vmax.f32 %v1976, %v1128
  %v1990 = vmax.f32 %v1977, %v1133
  %v1991 = vmax.f32 %v1978, %v1138
  %v1992 = vmax.f32 %v1979, %v1143
  %v1993 = vmax.f32 %v1980, %v1148
  %v1994 = vmax.f32 %v1981, %v1153
  %v1995 = vmax.f32 %v1982, %v1158
  %v1996 = vmax.f32 %v1983, %v1163
  %v1997 = vmax.f32 %v1984, %v1168
  %v1998 = vmax.f32 %v1985, %v1173
  %v1999 = vmax.f32 %v1986, %v1178
  %v2000 = vmax.f32 %v1987, %v1183
  %v2001 = vmax.f32 %v1988, %v1188
  %v2002 = vmax.f32 %v1989, %v1193
  %v2003 = vmax.f32 %v1990, %v1198
  %v2004 = vmax.f32 %v1991, %v1203
  %v2005 = vmax.f32 %v1992, %v1208
  %v2006 = vmax.f32 %v1993, %v1213
  %v2007 = vmax.f32 %v1994, %v1218
  %v2008 = vmax.f32 %v1995, %v1223
  %v2009 = vmax.f32 %v1996, %v1228
  %v2010 = vmax.f32 %v1997, %v1233
  %v2011 = vmax.f32 %v1998, %v1238
  %v2012 = vmax.f32 %v1999, %v1243
  %v2013 = vmax.f32 %v2000, %v1248
  %v2014 = vmax.f32 %v2001, %v1253
  %v2015 = vmax.f32 %v2002, %v1258
  %v2016 = vmax.f32 %v2003, %v1263
  %v2017 = vmax.f32 %v2004, %v1268
  %v2018 = vmax.f32 %v2005, %v1273
  %v2019 = vmax.f32 %v2006, %v1278
  %v2020 = vmax.f32 %v2007, %v1283
  %v2021 = vmax.f32 %v2008, %v1288
  %v2022 = vmax.f32 %v2009, %v1293
  %v2023 = vmax.f32 %v2010, %v1298
  %v2024 = vmax.f32 %v2011, %v1303
  %v2025 = vmax.f32 %v2012, %v1308
  %v2026 = vmax.f32 %v2013, %v1313
  %v2027 = vmax.f32 %v2014, %v1318
  %v2028 = vmax.f32 %v2015, %v1323
  %v2029 = vmax.f32 %v2016, %v1328
  %v2030 = vmax.f32 %v2017, %v1333
  %v2031 = vmax.f32 %v2018, %v1338
  %v2032 = vmax.f32 %v2019, %v1343
  %v2033 = vmax.f32 %v2020, %v1348
  %v2034 = vmax.f32 %v2021, %v1353
  %v2035 = vmax.f32 %v2022, %v1358
  %v2036 = vmax.f32 %v2023, %v1363
  %v2037 = vmax.f32 %v2024, %v1368
  %v2038 = vmax.f32 %v2025, %v1373
  %v2039 = vmax.f32 %v2026, %v1378
  %v2040 = vmax.f32 %v2027, %v1383
  %v2041 = vmax.f32 %v2028, %v1388
  %v2042 = vmax.f32 %v2029, %v1393
  %v2043 = vmax.f32 %v2030, %v1398
  %v2044 = vmax.f32 %v2031, %v1403
  %v2045 = vmax.f32 %v2032, %v1408
  %v2046 = vmax.f32 %v2033, %v1413
  %v2047 = vmax.f32 %v2034, %v1418
  %v2048 = vmax.f32 %v2035, %v1423
  %v2049 = vmax.f32 %v2036, %v1428
  %v2050 = vmax.f32 %v2037, %v1433
  %v2051 = vmax.f32 %v2038, %v1438
  %v2052 = vmax.f32 %v2039, %v1443
  %v2053 = vmax.f32 %v2040, %v1448
  %v2054 = vmax.f32 %v2041, %v1453
  %v2055 = vmax.f32 %v2042, %v1458
  %v2056 = vmax.f32 %v2043, %v1463
  %v2057 = vmax.f32 %v2044, %v1468
  %v2058 = vmax.f32 %v2045, %v1473
  %v2059 = vmax.f32 %v2046, %v1478
  %v2060 = vmax.f32 %v2047, %v1483
  %v2061 = vmax.f32 %v2048, %v1488
  %v2062 = vmax.f32 %v2049, %v1493
  %v2063 = vmax.f32 %v2050, %v1498
  %v2064 = vmax.f32 %v2051, %v1503
  %v2065 = vmax.f32 %v2052, %v1508
  %v2066 = vmax.f32 %v2053, %v1513
  %v2067 = vmax.f32 %v2054, %v1518
  %v2068 = vmax.f32 %v2055, %v1523
  %v2069 = vmax.f32 %v2056, %v1528
  %v2070 = vmax.f32 %v2057, %v1533
  %v2071 = vmax.f32 %v2058, %v1538
  %v2072 = vmax.f32 %v2059, %v1543
  %v2073 = vmax.f32 %v2060, %v1548
  %v2074 = vmax.f32 %v2061, %v1553
  %v2075 = vmax.f32 %v2062, %v1558
  %v2076 = vmax.f32 %v2063, %v1563
  %v2077 = vmax.f32 %v2064, %v1568
  %v2078 = vmax.f32 %v2065, %v1573
  %v2079 = vmax.f32 %v2066, %v1578
  %v2080 = vmax.f32 %v2067, %v1583
  %v2081 = vmax.f32 %v2068, %v1588
  %v2082 = vmax.f32 %v2069, %v1593
  %v2083 = vmax.f32 %v2070, %v1598
  %v2084 = vmax.f32 %v2071, %v1603
  %v2085 = vmax.f32 %v2072, %v1608
  %v2086 = vmax.f32 %v2073, %v1613
  %v2087 = vmax.f32 %v2074, %v1618
  %v2088 = vmax.f32 %v2075, %v1623
  %v2089 = vmax.f32 %v2076, %v1628
  %v2090 = vmax.f32 %v2077, %v1633
  %v2091 = vmax.f32 %v2078, %v1638
  %v2092 = vmax.f32 %v2079, %v1643
  %v2093 = vmax.f32 %v2080, %v1648
  %v2094 = vmax.f32 %v2081, %v1653
  %v2095 = vmax.f32 %v2082, %v1658
  %v2096 = vmax.f32 %v2083, %v1663
  %v2097 = vmax.f32 %v2084, %v1668
  %v2098 = vmax.f32 %v2085, %v1673
  %v2099 = vmax.f32 %v2086, %v1678
  %v2100 = vmax.f32 %v2087, %v1683
  %v2101 = vmax.f32 %v2088, %v1688
  %v2102 = vmax.f32 %v2089, %v1693
  %v2103 = vmax.f32 %v2090, %v1698
  %v2104 = vmax.f32 %v2091, %v1703
  %v2105 = vmax.f32 %v2092, %v1708
  %v2106 = vmax.f32 %v2093, %v1713
  %v2107 = vmax.f32 %v2094, %v1718
  %v2108 = vmax.f32 %v2095, %v1723
  %v2109 = vmax.f32 %v2096, %v1728
  %v2110 = vmax.f32 %v2097, %v1733
  %v2111 = vmax.f32 %v2098, %v1738
  %v2112 = vmax.f32 %v2099, %v1743
  %v2113 = vmax.f32 %v2100, %v1748
  %v2114 = vmax.f32 %v2101, %v1753
  %v2115 = vmax.f32 %v2102, %v1758
  %v2116 = vmax.f32 %v2103, %v1763
  %v2117 = vmax.f32 %v2104, %v1768
  %v2118 = vmax.f32 %v2105, %v1773
  %v2119 = vmax.f32 %v2106, %v1778
  %v2120 = vmax.f32 %v2107, %v1783
  %v2121 = vmax.f32 %v2108, %v1788
  %v2122 = vmax.f32 %v2109, %v1793
  %v2123 = vmax.f32 %v2110, %v1798
  %v2124 = vmax.f32 %v2111, %v1803
  %v2125 = vmax.f32 %v2112, %v1808
  %v2126 = vmax.f32 %v2113, %v1813
  %v2127 = vmax.f32 %v2114, %v1818
  %v2128 = vmax.f32 %v2115, %v1823
  %v2129 = vmax.f32 %v2116, %v1828
  %v2130 = vmax.f32 %v2117, %v1833
  %v2131 = vmax.f32 %v2118, %v1838
  %v2132 = vmax.f32 %v2119, %v1843
  %v2133 = vmax.f32 %v2120, %v1848
  %v2134 = vmax.f32 %v2121, %v1853
  %v2135 = vmax.f32 %v2122, %v1858
  %v2136 = vmax.f32 %v2123, %v1863
  %v2137 = vmax.f32 %v2124, %v1868
  %v2138 = vmax.f32 %v2125, %v1873
  %v2139 = vmax.f32 %v2126, %v1878
  %v2140 = vmax.f32 %v2127, %v1883
  %v2141 = vmax.f32 %v2128, %v1888
  %v2142 = vmax.f32 %v2129, %v1893
  %v2143 = vmax.f32 %v2130, %v1898
  %v2144 = vmax.f32 %v2131, %v1903
  %v2145 = vmax.f32 %v2132, %v1908
  %v2146 = vmax.f32 %v2133, %v1913
  %v2147 = vmax.f32 %v2134, %v1918
  %v2148 = vmax.f32 %v2135, %v1923
  %v2149 = vmax.f32 %v2136, %v1928
  %v2150 = vmax.f32 %v2137, %v1933
  %v2151 = vmax.f32 %v2138, %v1938
  %v2152 = vmax.f32 %v2139, %v1943
  %v2153 = vmax.f32 %v2140, %v1948
  %v2154 = vmax.f32 %v2141, %v1953
  %v2155 = vmax.f32 %v2142, %v1958
  %v2156 = vld [vmem:[%s2] sm:$0x1]
  %v2158 = vlaneseq
  %v2159 = vshrl.u32 %v2158, 7
  %v2160 = vsub.s32 0, %v2159
  %v2161 = vrot.slane %v2156, %v2160
  %v2163 = vadd.f32 %v2143, %v2161
  %v2164 = vadd.f32 %v2144, %v2161
  %v2165 = vadd.f32 %v2145, %v2161
  %v2166 = vadd.f32 %v2146, %v2161
  %v2167 = vadd.f32 %v2147, %v2161
  %v2168 = vadd.f32 %v2148, %v2161
  %v2169 = vadd.f32 %v2149, %v2161
  %v2170 = vadd.f32 %v2150, %v2161
  %v2171 = vadd.f32 %v2151, %v2161
  %v2172 = vadd.f32 %v2152, %v2161
  %v2173 = vadd.f32 %v2153, %v2161
  %v2174 = vadd.f32 %v2154, %v2161
  %v2175 = vadd.f32 %v2155, %v2161
  %v2176 = vmax.f32 %v2163, 0.0
  %v2177 = vmax.f32 %v2164, 0.0
  %v2178 = vmax.f32 %v2165, 0.0
  %v2179 = vmax.f32 %v2166, 0.0
  %v2180 = vmax.f32 %v2167, 0.0
  %v2181 = vmax.f32 %v2168, 0.0
  %v2182 = vmax.f32 %v2169, 0.0
  %v2183 = vmax.f32 %v2170, 0.0
  %v2184 = vmax.f32 %v2171, 0.0
  %v2185 = vmax.f32 %v2172, 0.0
  %v2186 = vmax.f32 %v2173, 0.0
  %v2187 = vmax.f32 %v2174, 0.0
  %v2188 = vmax.f32 %v2175, 0.0
  %vm2189 = vcmask 523264
  %2190 = vst.msk [vmem:[%s3] sm:$0xff] %vm2189, %v2176
  %2191 = vst.msk [vmem:[%s3 + $0x8] sm:$0xff] %vm2189, %v2177
  %2192 = vst.msk [vmem:[%s3 + $0x10] sm:$0xff] %vm2189, %v2178
  %2193 = vst.msk [vmem:[%s3 + $0x18] sm:$0xff] %vm2189, %v2179
  %2194 = vst.msk [vmem:[%s3 + $0x20] sm:$0xff] %vm2189, %v2180
  %2195 = vst.msk [vmem:[%s3 + $0x28] sm:$0xff] %vm2189, %v2181
  %2196 = vst.msk [vmem:[%s3 + $0x30] sm:$0xff] %vm2189, %v2182
  %2197 = vst.msk [vmem:[%s3 + $0x38] sm:$0xff] %vm2189, %v2183
  %2198 = vst.msk [vmem:[%s3 + $0x40] sm:$0xff] %vm2189, %v2184
  %2199 = vst.msk [vmem:[%s3 + $0x48] sm:$0xff] %vm2189, %v2185
  %2200 = vst.msk [vmem:[%s3 + $0x50] sm:$0xff] %vm2189, %v2186
  %2201 = vst.msk [vmem:[%s3 + $0x58] sm:$0xff] %vm2189, %v2187
  %2202 = vst.msk [vmem:[%s3 + $0x60] sm:$0xff] %vm2189, %v2188
  // Predicated region
  $region14: #{dqn_forward.2} parent=0 // pred_check
    _
  $region15: #{dqn_forward.2} parent=0 // pred_check_branch
    %2204 = sbr.rel (0) target = $region17
  $region16: #{dqn_forward.2} parent=0 // pred_region
    _
  $region17: #{dqn_forward.2} parent=0 // pred_fallthru
    _
  // Predicated region
  $region18: #{dqn_forward.2} parent=0 // pred_check
    _
  $region19: #{dqn_forward.2} parent=0 // pred_check_branch
    %2206 = sbr.rel (0) target = $region21
  $region20: #{dqn_forward.2} parent=0 // pred_region
    _
  $region21: #{dqn_forward.2} parent=0 // pred_fallthru
    _

// kernel: dqn_forward.3
$region0: #{dqn_forward.3}
  #allocation0 [shape = 'u32[]', space=smem, size = 0x4, offset = 0x4, fixed_abs, tag = 'smem constant byte address 0x4 - core index']
  #allocation1 [shape = 'u32[144,128]{1,0:T(1,128)}', space=vmem, size = 0x12000, scoped, tag = 'internal scratch']
  %s0 = inlined_call_operand.vmem [shape: f32[128,576], index: 0, kind: input, shape index: {}]
  %s1 = inlined_call_operand.vmem [shape: f32[576,64], index: 1, kind: input, shape index: {}]
  %s2 = inlined_call_operand.vmem [shape: f32[1,64], index: 2, kind: input, shape index: {}]
  %s3 = inlined_call_operand.vmem [shape: f32[64,32], index: 3, kind: input, shape index: {}]
  %s4 = inlined_call_operand.vmem [shape: f32[1,32], index: 4, kind: input, shape index: {}]
  %s5 = inlined_call_operand.vmem [shape: f32[32,32], index: 5, kind: input, shape index: {}]
  %s6 = inlined_call_operand.vmem [shape: f32[1,32], index: 6, kind: input, shape index: {}]
  %s7 = inlined_call_operand.vmem [shape: f32[32,7], index: 7, kind: input, shape index: {}]
  %s8 = inlined_call_operand.vmem [shape: f32[1,7], index: 8, kind: input, shape index: {}]
  %s9 = inlined_call_operand.hbm [shape: f32[2,6], index: 9, kind: output, shape index: {}]
  %s10 = sld [smem:[#allocation0]]
  $region46: #{dqn_forward.3} parent=0
    _
  %s12 = ssub.s32 1, %s10
  %s13 = scalar_select 0, %s12, %s10
  $region1: #{dqn_forward.3} parent=0
    #allocation2 [shape = 'u8[1024]{0}', space=vmem, size = 0x400, scoped, tag = 'output window, operand 0, single buffered']
    #allocation3 [shape = 's32[1]{0}', space=sflag, size = 0x4, scoped, tag = 'scoped memory for dqn_forward.3']
    %14 = vsyncpa [#allocation3], 0
    // Predicated region
    $region2: #{dqn_forward.3} parent=1 // pred_check
      _
    $region3: #{dqn_forward.3} parent=1 // pred_check_branch
      %16 = sbr.rel (0) target = $region5
    $region4: #{dqn_forward.3} parent=1 // pred_region
      _
    $region5: #{dqn_forward.3} parent=1 // pred_fallthru
      _
    // Predicated region
    $region6: #{dqn_forward.3} parent=1 // pred_check
      _
    $region7: #{dqn_forward.3} parent=1 // pred_check_branch
      %18 = sbr.rel (0) target = $region9
    $region8: #{dqn_forward.3} parent=1 // pred_region
      _
    $region9: #{dqn_forward.3} parent=1 // pred_fallthru
      _
    // Predicated region
    $region10: #{dqn_forward.3} parent=1 // pred_check
      _
    $region11: #{dqn_forward.3} parent=1 // pred_check_branch
      %20 = sbr.rel (0) target = $region13
    $region12: #{dqn_forward.3} parent=1 // pred_region
      _
    $region13: #{dqn_forward.3} parent=1 // pred_fallthru
      _
    // Predicated region
    $region14: #{dqn_forward.3} parent=1 // pred_check
      _
    $region15: #{dqn_forward.3} parent=1 // pred_check_branch
      %22 = sbr.rel (0) target = $region17
    $region16: #{dqn_forward.3} parent=1 // pred_region
      _
    $region17: #{dqn_forward.3} parent=1 // pred_fallthru
      _
    // Predicated region
    $region18: #{dqn_forward.3} parent=1 // pred_check
      _
    $region19: #{dqn_forward.3} parent=1 // pred_check_branch
      %24 = sbr.rel (0) target = $region21
    $region20: #{dqn_forward.3} parent=1 // pred_region
      _
    $region21: #{dqn_forward.3} parent=1 // pred_fallthru
      _
    // Predicated region
    $region22: #{dqn_forward.3} parent=1 // pred_check
      _
    $region23: #{dqn_forward.3} parent=1 // pred_check_branch
      %26 = sbr.rel (0) target = $region25
    $region24: #{dqn_forward.3} parent=1 // pred_region
      _
    $region25: #{dqn_forward.3} parent=1 // pred_fallthru
      _
    // Predicated region
    $region26: #{dqn_forward.3} parent=1 // pred_check
      _
    $region27: #{dqn_forward.3} parent=1 // pred_check_branch
      %28 = sbr.rel (0) target = $region29
    $region28: #{dqn_forward.3} parent=1 // pred_region
      _
    $region29: #{dqn_forward.3} parent=1 // pred_fallthru
      _
    // Predicated region
    $region30: #{dqn_forward.3} parent=1 // pred_check
      _
    $region31: #{dqn_forward.3} parent=1 // pred_check_branch
      %30 = sbr.rel (0) target = $region33
    $region32: #{dqn_forward.3} parent=1 // pred_region
      _
    $region33: #{dqn_forward.3} parent=1 // pred_fallthru
      _
    // Predicated region
    $region34: #{dqn_forward.3} parent=1 // pred_check
      _
    $region35: #{dqn_forward.3} parent=1 // pred_check_branch
      %32 = sbr.rel (0) target = $region37
    $region36: #{dqn_forward.3} parent=1 // pred_region
      _
    $region37: #{dqn_forward.3} parent=1 // pred_fallthru
      _
    %v33 = vld [vmem:[%s0] sm:$0xff]
    %v34 = vld [vmem:[%s0 + $0x8] sm:$0xff]
    %v35 = vld [vmem:[%s0 + $0x10] sm:$0xff]
    %v36 = vld [vmem:[%s0 + $0x18] sm:$0xff]
    %v37 = vld [vmem:[%s0 + $0x20] sm:$0xff]
    %v38 = vld [vmem:[%s0 + $0x28] sm:$0xff]
    %v39 = vld [vmem:[%s0 + $0x30] sm:$0xff]
    %v40 = vld [vmem:[%s0 + $0x38] sm:$0xff]
    %v41 = vld [vmem:[%s0 + $0x40] sm:$0xff]
    %v42 = vld [vmem:[%s0 + $0x48] sm:$0xff]
    %v43 = vld [vmem:[%s0 + $0x50] sm:$0xff]
    %v44 = vld [vmem:[%s0 + $0x58] sm:$0xff]
    %v45 = vld [vmem:[%s0 + $0x60] sm:$0xff]
    %v46 = vld [vmem:[%s0 + $0x68] sm:$0xff]
    %v47 = vld [vmem:[%s0 + $0x70] sm:$0xff]
    %v48 = vld [vmem:[%s0 + $0x78] sm:$0xff]
    %v49 = vld [vmem:[%s0 + $0x80] sm:$0xff]
    %v50 = vld [vmem:[%s0 + $0x88] sm:$0xff]
    %v51 = vld [vmem:[%s0 + $0x90] sm:$0xff]
    %v52 = vld [vmem:[%s0 + $0x98] sm:$0xff]
    %v53 = vld [vmem:[%s0 + $0xa0] sm:$0xff]
    %v54 = vld [vmem:[%s0 + $0xa8] sm:$0xff]
    %v55 = vld [vmem:[%s0 + $0xb0] sm:$0xff]
    %v56 = vld [vmem:[%s0 + $0xb8] sm:$0xff]
    %v57 = vld [vmem:[%s0 + $0xc0] sm:$0xff]
    %v58 = vld [vmem:[%s0 + $0xc8] sm:$0xff]
    %v59 = vld [vmem:[%s0 + $0xd0] sm:$0xff]
    %v60 = vld [vmem:[%s0 + $0xd8] sm:$0xff]
    %v61 = vld [vmem:[%s0 + $0xe0] sm:$0xff]
    %v62 = vld [vmem:[%s0 + $0xe8] sm:$0xff]
    %v63 = vld [vmem:[%s0 + $0xf0] sm:$0xff]
    %v64 = vld [vmem:[%s0 + $0xf8] sm:$0xff]
    %v65 = vld [vmem:[%s0 + $0x100] sm:$0xff]
    %v66 = vld [vmem:[%s0 + $0x108] sm:$0xff]
    %v67 = vld [vmem:[%s0 + $0x110] sm:$0xff]
    %v68 = vld [vmem:[%s0 + $0x118] sm:$0xff]
    %v69 = vld [vmem:[%s0 + $0x120] sm:$0xff]
    %v70 = vld [vmem:[%s0 + $0x128] sm:$0xff]
    %v71 = vld [vmem:[%s0 + $0x130] sm:$0xff]
    %v72 = vld [vmem:[%s0 + $0x138] sm:$0xff]
    %v73 = vld [vmem:[%s0 + $0x140] sm:$0xff]
    %v74 = vld [vmem:[%s0 + $0x148] sm:$0xff]
    %v75 = vld [vmem:[%s0 + $0x150] sm:$0xff]
    %v76 = vld [vmem:[%s0 + $0x158] sm:$0xff]
    %v77 = vld [vmem:[%s0 + $0x160] sm:$0xff]
    %v78 = vld [vmem:[%s0 + $0x168] sm:$0xff]
    %v79 = vld [vmem:[%s0 + $0x170] sm:$0xff]
    %v80 = vld [vmem:[%s0 + $0x178] sm:$0xff]
    %v81 = vld [vmem:[%s0 + $0x180] sm:$0xff]
    %v82 = vld [vmem:[%s0 + $0x188] sm:$0xff]
    %v83 = vld [vmem:[%s0 + $0x190] sm:$0xff]
    %v84 = vld [vmem:[%s0 + $0x198] sm:$0xff]
    %v85 = vld [vmem:[%s0 + $0x1a0] sm:$0xff]
    %v86 = vld [vmem:[%s0 + $0x1a8] sm:$0xff]
    %v87 = vld [vmem:[%s0 + $0x1b0] sm:$0xff]
    %v88 = vld [vmem:[%s0 + $0x1b8] sm:$0xff]
    %v89 = vld [vmem:[%s0 + $0x1c0] sm:$0xff]
    %v90 = vld [vmem:[%s0 + $0x1c8] sm:$0xff]
    %v91 = vld [vmem:[%s0 + $0x1d0] sm:$0xff]
    %v92 = vld [vmem:[%s0 + $0x1d8] sm:$0xff]
    %v93 = vld [vmem:[%s0 + $0x1e0] sm:$0xff]
    %v94 = vld [vmem:[%s0 + $0x1e8] sm:$0xff]
    %v95 = vld [vmem:[%s0 + $0x1f0] sm:$0xff]
    %v96 = vld [vmem:[%s0 + $0x1f8] sm:$0xff]
    %v97 = vld [vmem:[%s0 + $0x200] sm:$0xff]
    %v98 = vld [vmem:[%s0 + $0x208] sm:$0xff]
    %v99 = vld [vmem:[%s0 + $0x210] sm:$0xff]
    %v100 = vld [vmem:[%s0 + $0x218] sm:$0xff]
    %v101 = vld [vmem:[%s0 + $0x220] sm:$0xff]
    %v102 = vld [vmem:[%s0 + $0x228] sm:$0xff]
    %v103 = vld [vmem:[%s0 + $0x230] sm:$0xff]
    %v104 = vld [vmem:[%s0 + $0x238] sm:$0xff]
    %v105 = vld [vmem:[%s0 + $0x240] sm:$0xff]
    %v106 = vld [vmem:[%s0 + $0x248] sm:$0xff]
    %v107 = vld [vmem:[%s0 + $0x250] sm:$0xff]
    %v108 = vld [vmem:[%s0 + $0x258] sm:$0xff]
    %v109 = vld [vmem:[%s0 + $0x260] sm:$0xff]
    %v110 = vld [vmem:[%s0 + $0x268] sm:$0xff]
    %v111 = vld [vmem:[%s0 + $0x270] sm:$0xff]
    %v112 = vld [vmem:[%s0 + $0x278] sm:$0xff]
    %v113 = vld [vmem:[%s1] sm:$0xff]
    %v114 = vld [vmem:[%s1 + $0x8] sm:$0xff]
    %v115 = vld [vmem:[%s1 + $0x10] sm:$0xff]
    %v116 = vld [vmem:[%s1 + $0x18] sm:$0xff]
    %v117 = vld [vmem:[%s1 + $0x20] sm:$0xff]
    %v118 = vld [vmem:[%s1 + $0x28] sm:$0xff]
    %v119 = vld [vmem:[%s1 + $0x30] sm:$0xff]
    %v120 = vld [vmem:[%s1 + $0x38] sm:$0xff]
    %v121 = vld [vmem:[%s1 + $0x40] sm:$0xff]
    %v122 = vld [vmem:[%s1 + $0x48] sm:$0xff]
    %v123 = vld [vmem:[%s1 + $0x50] sm:$0xff]
    %v124 = vld [vmem:[%s1 + $0x58] sm:$0xff]
    %v125 = vld [vmem:[%s1 + $0x60] sm:$0xff]
    %v126 = vld [vmem:[%s1 + $0x68] sm:$0xff]
    %v127 = vld [vmem:[%s1 + $0x70] sm:$0xff]
    %v128 = vld [vmem:[%s1 + $0x78] sm:$0xff]
    %v129 = vld [vmem:[%s1 + $0x80] sm:$0xff]
    %v130 = vld [vmem:[%s1 + $0x88] sm:$0xff]
    %v131 = vld [vmem:[%s1 + $0x90] sm:$0xff]
    %v132 = vld [vmem:[%s1 + $0x98] sm:$0xff]
    %v133 = vld [vmem:[%s1 + $0xa0] sm:$0xff]
    %v134 = vld [vmem:[%s1 + $0xa8] sm:$0xff]
    %v135 = vld [vmem:[%s1 + $0xb0] sm:$0xff]
    %v136 = vld [vmem:[%s1 + $0xb8] sm:$0xff]
    %v137 = vld [vmem:[%s1 + $0xc0] sm:$0xff]
    %v138 = vld [vmem:[%s1 + $0xc8] sm:$0xff]
    %v139 = vld [vmem:[%s1 + $0xd0] sm:$0xff]
    %v140 = vld [vmem:[%s1 + $0xd8] sm:$0xff]
    %v141 = vld [vmem:[%s1 + $0xe0] sm:$0xff]
    %v142 = vld [vmem:[%s1 + $0xe8] sm:$0xff]
    %v143 = vld [vmem:[%s1 + $0xf0] sm:$0xff]
    %v144 = vld [vmem:[%s1 + $0xf8] sm:$0xff]
    %v145 = vld [vmem:[%s1 + $0x100] sm:$0xff]
    %v146 = vld [vmem:[%s1 + $0x108] sm:$0xff]
    %v147 = vld [vmem:[%s1 + $0x110] sm:$0xff]
    %v148 = vld [vmem:[%s1 + $0x118] sm:$0xff]
    %v149 = vld [vmem:[%s1 + $0x120] sm:$0xff]
    %v150 = vld [vmem:[%s1 + $0x128] sm:$0xff]
    %v151 = vld [vmem:[%s1 + $0x130] sm:$0xff]
    %v152 = vld [vmem:[%s1 + $0x138] sm:$0xff]
    %v153 = vld [vmem:[%s1 + $0x140] sm:$0xff]
    %v154 = vld [vmem:[%s1 + $0x148] sm:$0xff]
    %v155 = vld [vmem:[%s1 + $0x150] sm:$0xff]
    %v156 = vld [vmem:[%s1 + $0x158] sm:$0xff]
    %v157 = vld [vmem:[%s1 + $0x160] sm:$0xff]
    %v158 = vld [vmem:[%s1 + $0x168] sm:$0xff]
    %v159 = vld [vmem:[%s1 + $0x170] sm:$0xff]
    %v160 = vld [vmem:[%s1 + $0x178] sm:$0xff]
    %v161 = vld [vmem:[%s1 + $0x180] sm:$0xff]
    %v162 = vld [vmem:[%s1 + $0x188] sm:$0xff]
    %v163 = vld [vmem:[%s1 + $0x190] sm:$0xff]
    %v164 = vld [vmem:[%s1 + $0x198] sm:$0xff]
    %v165 = vld [vmem:[%s1 + $0x1a0] sm:$0xff]
    %v166 = vld [vmem:[%s1 + $0x1a8] sm:$0xff]
    %v167 = vld [vmem:[%s1 + $0x1b0] sm:$0xff]
    %v168 = vld [vmem:[%s1 + $0x1b8] sm:$0xff]
    %v169 = vld [vmem:[%s1 + $0x1c0] sm:$0xff]
    %v170 = vld [vmem:[%s1 + $0x1c8] sm:$0xff]
    %v171 = vld [vmem:[%s1 + $0x1d0] sm:$0xff]
    %v172 = vld [vmem:[%s1 + $0x1d8] sm:$0xff]
    %v173 = vld [vmem:[%s1 + $0x1e0] sm:$0xff]
    %v174 = vld [vmem:[%s1 + $0x1e8] sm:$0xff]
    %v175 = vld [vmem:[%s1 + $0x1f0] sm:$0xff]
    %v176 = vld [vmem:[%s1 + $0x1f8] sm:$0xff]
    %v177 = vld [vmem:[%s1 + $0x200] sm:$0xff]
    %v178 = vld [vmem:[%s1 + $0x208] sm:$0xff]
    %v179 = vld [vmem:[%s1 + $0x210] sm:$0xff]
    %v180 = vld [vmem:[%s1 + $0x218] sm:$0xff]
    %v181 = vld [vmem:[%s1 + $0x220] sm:$0xff]
    %v182 = vld [vmem:[%s1 + $0x228] sm:$0xff]
    %v183 = vld [vmem:[%s1 + $0x230] sm:$0xff]
    %v184 = vld [vmem:[%s1 + $0x238] sm:$0xff]
    %vm185 = vcmask 523264
    %v187 = vsel %vm185, %v37, 0
    %v190 = vsel %vm185, %v42, 0
    %v193 = vsel %vm185, %v47, 0
    %v196 = vsel %vm185, %v52, 0
    %v199 = vsel %vm185, %v57, 0
    %v202 = vsel %vm185, %v62, 0
    %v205 = vsel %vm185, %v67, 0
    %v208 = vsel %vm185, %v72, 0
    %v211 = vsel %vm185, %v77, 0
    %v214 = vsel %vm185, %v82, 0
    %v217 = vsel %vm185, %v87, 0
    %v220 = vsel %vm185, %v92, 0
    %v223 = vsel %vm185, %v97, 0
    %v226 = vsel %vm185, %v102, 0
    %v229 = vsel %vm185, %v107, 0
    %v232 = vsel %vm185, %v112, 0
    %234 = vmatprep.subr.mxu0 0.0
    %235 = vmatpush1.msra.mxu0 %v128
    %236 = vmatprep.subr.mxu0 0.0
    %237 = vmatpush1.msra.mxu0 %v127
    %238 = vmatprep.subr.mxu0 0.0
    %239 = vmatpush1.msra.mxu0 %v126
    %240 = vmatprep.subr.mxu0 0.0
    %241 = vmatpush1.msra.mxu0 %v125
    %242 = vmatprep.subr.mxu0 0.0
    %243 = vmatpush1.msra.mxu0 %v124
    %244 = vmatprep.subr.mxu0 0.0
    %245 = vmatpush1.msra.mxu0 %v123
    %246 = vmatprep.subr.mxu0 0.0
    %247 = vmatpush1.msra.mxu0 %v122
    %248 = vmatprep.subr.mxu0 0.0
    %249 = vmatpush1.msra.mxu0 %v121
    %250 = vmatprep.subr.mxu0 0.0
    %251 = vmatpush1.msra.mxu0 %v120
    %252 = vmatprep.subr.mxu0 0.0
    %253 = vmatpush1.msra.mxu0 %v119
    %254 = vmatprep.subr.mxu0 0.0
    %255 = vmatpush1.msra.mxu0 %v118
    %256 = vmatprep.subr.mxu0 0.0
    %257 = vmatpush1.msra.mxu0 %v117
    %258 = vmatprep.subr.mxu0 0.0
    %259 = vmatpush1.msra.mxu0 %v116
    %260 = vmatprep.subr.mxu0 0.0
    %261 = vmatpush1.msra.mxu0 %v115
    %262 = vmatprep.subr.mxu0 0.0
    %263 = vmatpush1.msra.mxu0 %v114
    %264 = vmatprep.subr.mxu0 0.0
    %265 = vmatpush1.msra.mxu0 %v113
    %266 = vmatprep.subr.mxu0 0.0
    %267 = vmatpush2.msra.mxu0 %v144
    %268 = vmatprep.subr.mxu0 0.0
    %269 = vmatpush2.msra.mxu0 %v143
    %270 = vmatprep.subr.mxu0 0.0
    %271 = vmatpush2.msra.mxu0 %v142
    %272 = vmatprep.subr.mxu0 0.0
    %273 = vmatpush2.msra.mxu0 %v141
    %274 = vmatprep.subr.mxu0 0.0
    %275 = vmatpush2.msra.mxu0 %v140
    %276 = vmatprep.subr.mxu0 0.0
    %277 = vmatpush2.msra.mxu0 %v139
    %278 = vmatprep.subr.mxu0 0.0
    %279 = vmatpush2.msra.mxu0 %v138
    %280 = vmatprep.subr.mxu0 0.0
    %281 = vmatpush2.msra.mxu0 %v137
    %282 = vmatprep.subr.mxu0 0.0
    %283 = vmatpush2.msra.mxu0 %v136
    %284 = vmatprep.subr.mxu0 0.0
    %285 = vmatpush2.msra.mxu0 %v135
    %286 = vmatprep.subr.mxu0 0.0
    %287 = vmatpush2.msra.mxu0 %v134
    %288 = vmatprep.subr.mxu0 0.0
    %289 = vmatpush2.msra.mxu0 %v133
    %290 = vmatprep.subr.mxu0 0.0
    %291 = vmatpush2.msra.mxu0 %v132
    %292 = vmatprep.subr.mxu0 0.0
    %293 = vmatpush2.msra.mxu0 %v131
    %294 = vmatprep.subr.mxu0 0.0
    %295 = vmatpush2.msra.mxu0 %v130
    %296 = vmatprep.subr.mxu0 0.0
    %297 = vmatpush2.msra.mxu0 %v129
    %298 = vmatprep.mubr.f32.mxu0 %v34
    %299 = vmatmul.mubr.f32.gmra.mxu0 %v33
    %v300 = vpop.f32.mrf.mxu0
    %v301 = vadd.f32 0.0, %v300
    %v302 = vpop.f32.mrf.mxu0
    %303 = vmatprep.mubr.f32.mxu0 %v39
    %304 = vmatmul.mubr.f32.gmra.mxu0 %v38
    %v305 = vpop.f32.mrf.mxu0
    %v306 = vadd.f32 0.0, %v305
    %v307 = vpop.f32.mrf.mxu0
    %308 = vmatprep.mubr.f32.mxu0 %v44
    %309 = vmatmul.mubr.f32.gmra.mxu0 %v43
    %v310 = vpop.f32.mrf.mxu0
    %v311 = vadd.f32 0.0, %v310
    %v312 = vpop.f32.mrf.mxu0
    %313 = vmatprep.mubr.f32.mxu0 %v49
    %314 = vmatmul.mubr.f32.gmra.mxu0 %v48
    %v315 = vpop.f32.mrf.mxu0
    %v316 = vadd.f32 0.0, %v315
    %v317 = vpop.f32.mrf.mxu0
    %318 = vmatprep.mubr.f32.mxu0 %v54
    %319 = vmatmul.mubr.f32.gmra.mxu0 %v53
    %v320 = vpop.f32.mrf.mxu0
    %v321 = vadd.f32 0.0, %v320
    %v322 = vpop.f32.mrf.mxu0
    %323 = vmatprep.mubr.f32.mxu0 %v59
    %324 = vmatmul.mubr.f32.gmra.mxu0 %v58
    %v325 = vpop.f32.mrf.mxu0
    %v326 = vadd.f32 0.0, %v325
    %v327 = vpop.f32.mrf.mxu0
    %328 = vmatprep.mubr.f32.mxu0 %v64
    %329 = vmatmul.mubr.f32.gmra.mxu0 %v63
    %v330 = vpop.f32.mrf.mxu0
    %v331 = vadd.f32 0.0, %v330
    %v332 = vpop.f32.mrf.mxu0
    %333 = vmatprep.mubr.f32.mxu0 %v69
    %334 = vmatmul.mubr.f32.gmra.mxu0 %v68
    %v335 = vpop.f32.mrf.mxu0
    %v336 = vadd.f32 0.0, %v335
    %v337 = vpop.f32.mrf.mxu0
    %338 = vmatprep.mubr.f32.mxu0 %v74
    %339 = vmatmul.mubr.f32.gmra.mxu0 %v73
    %v340 = vpop.f32.mrf.mxu0
    %v341 = vadd.f32 0.0, %v340
    %v342 = vpop.f32.mrf.mxu0
    %343 = vmatprep.mubr.f32.mxu0 %v79
    %344 = vmatmul.mubr.f32.gmra.mxu0 %v78
    %v345 = vpop.f32.mrf.mxu0
    %v346 = vadd.f32 0.0, %v345
    %v347 = vpop.f32.mrf.mxu0
    %348 = vmatprep.mubr.f32.mxu0 %v84
    %349 = vmatmul.mubr.f32.gmra.mxu0 %v83
    %v350 = vpop.f32.mrf.mxu0
    %v351 = vadd.f32 0.0, %v350
    %v352 = vpop.f32.mrf.mxu0
    %353 = vmatprep.mubr.f32.mxu0 %v89
    %354 = vmatmul.mubr.f32.gmra.mxu0 %v88
    %v355 = vpop.f32.mrf.mxu0
    %v356 = vadd.f32 0.0, %v355
    %v357 = vpop.f32.mrf.mxu0
    %358 = vmatprep.mubr.f32.mxu0 %v94
    %359 = vmatmul.mubr.f32.gmra.mxu0 %v93
    %v360 = vpop.f32.mrf.mxu0
    %v361 = vadd.f32 0.0, %v360
    %v362 = vpop.f32.mrf.mxu0
    %363 = vmatprep.mubr.f32.mxu0 %v99
    %364 = vmatmul.mubr.f32.gmra.mxu0 %v98
    %v365 = vpop.f32.mrf.mxu0
    %v366 = vadd.f32 0.0, %v365
    %v367 = vpop.f32.mrf.mxu0
    %368 = vmatprep.mubr.f32.mxu0 %v104
    %369 = vmatmul.mubr.f32.gmra.mxu0 %v103
    %v370 = vpop.f32.mrf.mxu0
    %v371 = vadd.f32 0.0, %v370
    %v372 = vpop.f32.mrf.mxu0
    %373 = vmatprep.mubr.f32.mxu0 %v109
    %374 = vmatmul.mubr.f32.gmra.mxu0 %v108
    %v375 = vpop.f32.mrf.mxu0
    %v376 = vadd.f32 0.0, %v375
    %v377 = vpop.f32.mrf.mxu0
    %378 = vdwg.mxu0
    %379 = vmatprep.subr.mxu0 0.0
    %380 = vmatpush1.msra.mxu0 %v160
    %381 = vmatprep.subr.mxu0 0.0
    %382 = vmatpush1.msra.mxu0 %v159
    %383 = vmatprep.subr.mxu0 0.0
    %384 = vmatpush1.msra.mxu0 %v158
    %385 = vmatprep.subr.mxu0 0.0
    %386 = vmatpush1.msra.mxu0 %v157
    %387 = vmatprep.subr.mxu0 0.0
    %388 = vmatpush1.msra.mxu0 %v156
    %389 = vmatprep.subr.mxu0 0.0
    %390 = vmatpush1.msra.mxu0 %v155
    %391 = vmatprep.subr.mxu0 0.0
    %392 = vmatpush1.msra.mxu0 %v154
    %393 = vmatprep.subr.mxu0 0.0
    %394 = vmatpush1.msra.mxu0 %v153
    %395 = vmatprep.subr.mxu0 0.0
    %396 = vmatpush1.msra.mxu0 %v152
    %397 = vmatprep.subr.mxu0 0.0
    %398 = vmatpush1.msra.mxu0 %v151
    %399 = vmatprep.subr.mxu0 0.0
    %400 = vmatpush1.msra.mxu0 %v150
    %401 = vmatprep.subr.mxu0 0.0
    %402 = vmatpush1.msra.mxu0 %v149
    %403 = vmatprep.subr.mxu0 0.0
    %404 = vmatpush1.msra.mxu0 %v148
    %405 = vmatprep.subr.mxu0 0.0
    %406 = vmatpush1.msra.mxu0 %v147
    %407 = vmatprep.subr.mxu0 0.0
    %408 = vmatpush1.msra.mxu0 %v146
    %409 = vmatprep.subr.mxu0 0.0
    %410 = vmatpush1.msra.mxu0 %v145
    %411 = vmatprep.subr.mxu0 0.0
    %412 = vmatpush2.msra.mxu0 %v176
    %413 = vmatprep.subr.mxu0 0.0
    %414 = vmatpush2.msra.mxu0 %v175
    %415 = vmatprep.subr.mxu0 0.0
    %416 = vmatpush2.msra.mxu0 %v174
    %417 = vmatprep.subr.mxu0 0.0
    %418 = vmatpush2.msra.mxu0 %v173
    %419 = vmatprep.subr.mxu0 0.0
    %420 = vmatpush2.msra.mxu0 %v172
    %421 = vmatprep.subr.mxu0 0.0
    %422 = vmatpush2.msra.mxu0 %v171
    %423 = vmatprep.subr.mxu0 0.0
    %424 = vmatpush2.msra.mxu0 %v170
    %425 = vmatprep.subr.mxu0 0.0
    %426 = vmatpush2.msra.mxu0 %v169
    %427 = vmatprep.subr.mxu0 0.0
    %428 = vmatpush2.msra.mxu0 %v168
    %429 = vmatprep.subr.mxu0 0.0
    %430 = vmatpush2.msra.mxu0 %v167
    %431 = vmatprep.subr.mxu0 0.0
    %432 = vmatpush2.msra.mxu0 %v166
    %433 = vmatprep.subr.mxu0 0.0
    %434 = vmatpush2.msra.mxu0 %v165
    %435 = vmatprep.subr.mxu0 0.0
    %436 = vmatpush2.msra.mxu0 %v164
    %437 = vmatprep.subr.mxu0 0.0
    %438 = vmatpush2.msra.mxu0 %v163
    %439 = vmatprep.subr.mxu0 0.0
    %440 = vmatpush2.msra.mxu0 %v162
    %441 = vmatprep.subr.mxu0 0.0
    %442 = vmatpush2.msra.mxu0 %v161
    %443 = vmatprep.mubr.f32.mxu0 %v36
    %444 = vmatmul.mubr.f32.gmra.mxu0 %v35
    %v445 = vpop.f32.mrf.mxu0
    %v446 = vadd.f32 %v301, %v445
    %v447 = vpop.f32.mrf.mxu0
    %448 = vmatprep.mubr.f32.mxu0 %v41
    %449 = vmatmul.mubr.f32.gmra.mxu0 %v40
    %v450 = vpop.f32.mrf.mxu0
    %v451 = vadd.f32 %v306, %v450
    %v452 = vpop.f32.mrf.mxu0
    %453 = vmatprep.mubr.f32.mxu0 %v46
    %454 = vmatmul.mubr.f32.gmra.mxu0 %v45
    %v455 = vpop.f32.mrf.mxu0
    %v456 = vadd.f32 %v311, %v455
    %v457 = vpop.f32.mrf.mxu0
    %458 = vmatprep.mubr.f32.mxu0 %v51
    %459 = vmatmul.mubr.f32.gmra.mxu0 %v50
    %v460 = vpop.f32.mrf.mxu0
    %v461 = vadd.f32 %v316, %v460
    %v462 = vpop.f32.mrf.mxu0
    %463 = vmatprep.mubr.f32.mxu0 %v56
    %464 = vmatmul.mubr.f32.gmra.mxu0 %v55
    %v465 = vpop.f32.mrf.mxu0
    %v466 = vadd.f32 %v321, %v465
    %v467 = vpop.f32.mrf.mxu0
    %468 = vmatprep.mubr.f32.mxu0 %v61
    %469 = vmatmul.mubr.f32.gmra.mxu0 %v60
    %v470 = vpop.f32.mrf.mxu0
    %v471 = vadd.f32 %v326, %v470
    %v472 = vpop.f32.mrf.mxu0
    %473 = vmatprep.mubr.f32.mxu0 %v66
    %474 = vmatmul.mubr.f32.gmra.mxu0 %v65
    %v475 = vpop.f32.mrf.mxu0
    %v476 = vadd.f32 %v331, %v475
    %v477 = vpop.f32.mrf.mxu0
    %478 = vmatprep.mubr.f32.mxu0 %v71
    %479 = vmatmul.mubr.f32.gmra.mxu0 %v70
    %v480 = vpop.f32.mrf.mxu0
    %v481 = vadd.f32 %v336, %v480
    %v482 = vpop.f32.mrf.mxu0
    %483 = vmatprep.mubr.f32.mxu0 %v76
    %484 = vmatmul.mubr.f32.gmra.mxu0 %v75
    %v485 = vpop.f32.mrf.mxu0
    %v486 = vadd.f32 %v341, %v485
    %v487 = vpop.f32.mrf.mxu0
    %488 = vmatprep.mubr.f32.mxu0 %v81
    %489 = vmatmul.mubr.f32.gmra.mxu0 %v80
    %v490 = vpop.f32.mrf.mxu0
    %v491 = vadd.f32 %v346, %v490
    %v492 = vpop.f32.mrf.mxu0
    %493 = vmatprep.mubr.f32.mxu0 %v86
    %494 = vmatmul.mubr.f32.gmra.mxu0 %v85
    %v495 = vpop.f32.mrf.mxu0
    %v496 = vadd.f32 %v351, %v495
    %v497 = vpop.f32.mrf.mxu0
    %498 = vmatprep.mubr.f32.mxu0 %v91
    %499 = vmatmul.mubr.f32.gmra.mxu0 %v90
    %v500 = vpop.f32.mrf.mxu0
    %v501 = vadd.f32 %v356, %v500
    %v502 = vpop.f32.mrf.mxu0
    %503 = vmatprep.mubr.f32.mxu0 %v96
    %504 = vmatmul.mubr.f32.gmra.mxu0 %v95
    %v505 = vpop.f32.mrf.mxu0
    %v506 = vadd.f32 %v361, %v505
    %v507 = vpop.f32.mrf.mxu0
    %508 = vmatprep.mubr.f32.mxu0 %v101
    %509 = vmatmul.mubr.f32.gmra.mxu0 %v100
    %v510 = vpop.f32.mrf.mxu0
    %v511 = vadd.f32 %v366, %v510
    %v512 = vpop.f32.mrf.mxu0
    %513 = vmatprep.mubr.f32.mxu0 %v106
    %514 = vmatmul.mubr.f32.gmra.mxu0 %v105
    %v515 = vpop.f32.mrf.mxu0
    %v516 = vadd.f32 %v371, %v515
    %v517 = vpop.f32.mrf.mxu0
    %518 = vmatprep.mubr.f32.mxu0 %v111
    %519 = vmatmul.mubr.f32.gmra.mxu0 %v110
    %v520 = vpop.f32.mrf.mxu0
    %v521 = vadd.f32 %v376, %v520
    %v522 = vpop.f32.mrf.mxu0
    %523 = vdwg.mxu0
    %524 = vmatprep.subr.mxu0 0.0
    %525 = vmatpush1.msra.mxu0 0.0
    %526 = vmatprep.subr.mxu0 0.0
    %527 = vmatpush1.msra.mxu0 0.0
    %528 = vmatprep.subr.mxu0 0.0
    %529 = vmatpush1.msra.mxu0 0.0
    %530 = vmatprep.subr.mxu0 0.0
    %531 = vmatpush1.msra.mxu0 0.0
    %532 = vmatprep.subr.mxu0 0.0
    %533 = vmatpush1.msra.mxu0 0.0
    %534 = vmatprep.subr.mxu0 0.0
    %535 = vmatpush1.msra.mxu0 0.0
    %536 = vmatprep.subr.mxu0 0.0
    %537 = vmatpush1.msra.mxu0 0.0
    %538 = vmatprep.subr.mxu0 0.0
    %539 = vmatpush1.msra.mxu0 0.0
    %540 = vmatprep.subr.mxu0 0.0
    %541 = vmatpush1.msra.mxu0 %v184
    %542 = vmatprep.subr.mxu0 0.0
    %543 = vmatpush1.msra.mxu0 %v183
    %544 = vmatprep.subr.mxu0 0.0
    %545 = vmatpush1.msra.mxu0 %v182
    %546 = vmatprep.subr.mxu0 0.0
    %547 = vmatpush1.msra.mxu0 %v181
    %548 = vmatprep.subr.mxu0 0.0
    %549 = vmatpush1.msra.mxu0 %v180
    %550 = vmatprep.subr.mxu0 0.0
    %551 = vmatpush1.msra.mxu0 %v179
    %552 = vmatprep.subr.mxu0 0.0
    %553 = vmatpush1.msra.mxu0 %v178
    %554 = vmatprep.subr.mxu0 0.0
    %555 = vmatpush1.msra.mxu0 %v177
    %556 = vmatprep.subr.mxu0 0.0
    %557 = vmatpush2.msra.mxu0 0.0
    %558 = vmatprep.subr.mxu0 0.0
    %559 = vmatpush2.msra.mxu0 0.0
    %560 = vmatprep.subr.mxu0 0.0
    %561 = vmatpush2.msra.mxu0 0.0
    %562 = vmatprep.subr.mxu0 0.0
    %563 = vmatpush2.msra.mxu0 0.0
    %564 = vmatprep.subr.mxu0 0.0
    %565 = vmatpush2.msra.mxu0 0.0
    %566 = vmatprep.subr.mxu0 0.0
    %567 = vmatpush2.msra.mxu0 0.0
    %568 = vmatprep.subr.mxu0 0.0
    %569 = vmatpush2.msra.mxu0 0.0
    %570 = vmatprep.subr.mxu0 0.0
    %571 = vmatpush2.msra.mxu0 0.0
    %572 = vmatprep.subr.mxu0 0.0
    %573 = vmatpush2.msra.mxu0 0.0
    %574 = vmatprep.subr.mxu0 0.0
    %575 = vmatpush2.msra.mxu0 0.0
    %576 = vmatprep.subr.mxu0 0.0
    %577 = vmatpush2.msra.mxu0 0.0
    %578 = vmatprep.subr.mxu0 0.0
    %579 = vmatpush2.msra.mxu0 0.0
    %580 = vmatprep.subr.mxu0 0.0
    %581 = vmatpush2.msra.mxu0 0.0
    %582 = vmatprep.subr.mxu0 0.0
    %583 = vmatpush2.msra.mxu0 0.0
    %584 = vmatprep.subr.mxu0 0.0
    %585 = vmatpush2.msra.mxu0 0.0
    %586 = vmatprep.subr.mxu0 0.0
    %587 = vmatpush2.msra.mxu0 0.0
    %588 = vmatprep.mubr.f32.mxu0 0.0
    %589 = vmatmul.mubr.f32.gmra.mxu0 %v187
    %v590 = vpop.f32.mrf.mxu0
    %v591 = vadd.f32 %v446, %v590
    %v592 = vpop.f32.mrf.mxu0
    %593 = vmatprep.mubr.f32.mxu0 0.0
    %594 = vmatmul.mubr.f32.gmra.mxu0 %v190
    %v595 = vpop.f32.mrf.mxu0
    %v596 = vadd.f32 %v451, %v595
    %v597 = vpop.f32.mrf.mxu0
    %598 = vmatprep.mubr.f32.mxu0 0.0
    %599 = vmatmul.mubr.f32.gmra.mxu0 %v193
    %v600 = vpop.f32.mrf.mxu0
    %v601 = vadd.f32 %v456, %v600
    %v602 = vpop.f32.mrf.mxu0
    %603 = vmatprep.mubr.f32.mxu0 0.0
    %604 = vmatmul.mubr.f32.gmra.mxu0 %v196
    %v605 = vpop.f32.mrf.mxu0
    %v606 = vadd.f32 %v461, %v605
    %v607 = vpop.f32.mrf.mxu0
    %608 = vmatprep.mubr.f32.mxu0 0.0
    %609 = vmatmul.mubr.f32.gmra.mxu0 %v199
    %v610 = vpop.f32.mrf.mxu0
    %v611 = vadd.f32 %v466, %v610
    %v612 = vpop.f32.mrf.mxu0
    %613 = vmatprep.mubr.f32.mxu0 0.0
    %614 = vmatmul.mubr.f32.gmra.mxu0 %v202
    %v615 = vpop.f32.mrf.mxu0
    %v616 = vadd.f32 %v471, %v615
    %v617 = vpop.f32.mrf.mxu0
    %618 = vmatprep.mubr.f32.mxu0 0.0
    %619 = vmatmul.mubr.f32.gmra.mxu0 %v205
    %v620 = vpop.f32.mrf.mxu0
    %v621 = vadd.f32 %v476, %v620
    %v622 = vpop.f32.mrf.mxu0
    %623 = vmatprep.mubr.f32.mxu0 0.0
    %624 = vmatmul.mubr.f32.gmra.mxu0 %v208
    %v625 = vpop.f32.mrf.mxu0
    %v626 = vadd.f32 %v481, %v625
    %v627 = vpop.f32.mrf.mxu0
    %628 = vmatprep.mubr.f32.mxu0 0.0
    %629 = vmatmul.mubr.f32.gmra.mxu0 %v211
    %v630 = vpop.f32.mrf.mxu0
    %v631 = vadd.f32 %v486, %v630
    %v632 = vpop.f32.mrf.mxu0
    %633 = vmatprep.mubr.f32.mxu0 0.0
    %634 = vmatmul.mubr.f32.gmra.mxu0 %v214
    %v635 = vpop.f32.mrf.mxu0
    %v636 = vadd.f32 %v491, %v635
    %v637 = vpop.f32.mrf.mxu0
    %638 = vmatprep.mubr.f32.mxu0 0.0
    %639 = vmatmul.mubr.f32.gmra.mxu0 %v217
    %v640 = vpop.f32.mrf.mxu0
    %v641 = vadd.f32 %v496, %v640
    %v642 = vpop.f32.mrf.mxu0
    %643 = vmatprep.mubr.f32.mxu0 0.0
    %644 = vmatmul.mubr.f32.gmra.mxu0 %v220
    %v645 = vpop.f32.mrf.mxu0
    %v646 = vadd.f32 %v501, %v645
    %v647 = vpop.f32.mrf.mxu0
    %648 = vmatprep.mubr.f32.mxu0 0.0
    %649 = vmatmul.mubr.f32.gmra.mxu0 %v223
    %v650 = vpop.f32.mrf.mxu0
    %v651 = vadd.f32 %v506, %v650
    %v652 = vpop.f32.mrf.mxu0
    %653 = vmatprep.mubr.f32.mxu0 0.0
    %654 = vmatmul.mubr.f32.gmra.mxu0 %v226
    %v655 = vpop.f32.mrf.mxu0
    %v656 = vadd.f32 %v511, %v655
    %v657 = vpop.f32.mrf.mxu0
    %658 = vmatprep.mubr.f32.mxu0 0.0
    %659 = vmatmul.mubr.f32.gmra.mxu0 %v229
    %v660 = vpop.f32.mrf.mxu0
    %v661 = vadd.f32 %v516, %v660
    %v662 = vpop.f32.mrf.mxu0
    %663 = vmatprep.mubr.f32.mxu0 0.0
    %664 = vmatmul.mubr.f32.gmra.mxu0 %v232
    %v665 = vpop.f32.mrf.mxu0
    %v666 = vadd.f32 %v521, %v665
    %v667 = vpop.f32.mrf.mxu0
    %668 = vdwg.mxu0
    %v669 = vmax.f32 %v591, %v596
    %v670 = vmax.f32 %v669, %v601
    %v671 = vmax.f32 %v670, %v606
    %v672 = vmax.f32 %v671, %v611
    %v673 = vmax.f32 %v672, %v616
    %v674 = vmax.f32 %v673, %v621
    %v675 = vmax.f32 %v674, %v626
    %v676 = vmax.f32 %v675, %v631
    %v677 = vmax.f32 %v676, %v636
    %v678 = vmax.f32 %v677, %v641
    %v679 = vmax.f32 %v678, %v646
    %v680 = vmax.f32 %v679, %v651
    %v681 = vmax.f32 %v680, %v656
    %v682 = vmax.f32 %v681, %v661
    %v683 = vmax.f32 %v682, %v666
    %v684 = vld [vmem:[%s2] sm:$0x1]
    %v686 = vlaneseq
    %v687 = vshrl.u32 %v686, 7
    %v688 = vsub.s32 0, %v687
    %v689 = vrot.slane %v684, %v688
    %v691 = vadd.f32 %v683, %v689
    %v692 = vmax.f32 %v691, 0.0
    %v693 = vld [vmem:[%s3] sm:$0xff]
    %v694 = vld [vmem:[%s3 + $0x8] sm:$0xff]
    %v695 = vld [vmem:[%s3 + $0x10] sm:$0xff]
    %v696 = vld [vmem:[%s3 + $0x18] sm:$0xff]
    %v697 = vld [vmem:[%s3 + $0x20] sm:$0xff]
    %v698 = vld [vmem:[%s3 + $0x28] sm:$0xff]
    %v699 = vld [vmem:[%s3 + $0x30] sm:$0xff]
    %v700 = vld [vmem:[%s3 + $0x38] sm:$0xff]
    %v701 = vld [vmem:[%s4] sm:$0x1]
    %v703 = vlaneseq
    %v704 = vshrl.u32 %v703, 7
    %v705 = vsub.s32 0, %v704
    %v706 = vrot.slane %v701, %v705
    %v709 = vsel %vm185, %v692, 0
    %711 = vmatprep.subr.mxu0 0.0
    %712 = vmatpush1.msra.mxu0 0.0
    %713 = vmatprep.subr.mxu0 0.0
    %714 = vmatpush1.msra.mxu0 0.0
    %715 = vmatprep.subr.mxu0 0.0
    %716 = vmatpush1.msra.mxu0 0.0
    %717 = vmatprep.subr.mxu0 0.0
    %718 = vmatpush1.msra.mxu0 0.0
    %719 = vmatprep.subr.mxu0 0.0
    %720 = vmatpush1.msra.mxu0 0.0
    %721 = vmatprep.subr.mxu0 0.0
    %722 = vmatpush1.msra.mxu0 0.0
    %723 = vmatprep.subr.mxu0 0.0
    %724 = vmatpush1.msra.mxu0 0.0
    %725 = vmatprep.subr.mxu0 0.0
    %726 = vmatpush1.msra.mxu0 0.0
    %727 = vmatprep.subr.mxu0 0.0
    %728 = vmatpush1.msra.mxu0 %v700
    %729 = vmatprep.subr.mxu0 0.0
    %730 = vmatpush1.msra.mxu0 %v699
    %731 = vmatprep.subr.mxu0 0.0
    %732 = vmatpush1.msra.mxu0 %v698
    %733 = vmatprep.subr.mxu0 0.0
    %734 = vmatpush1.msra.mxu0 %v697
    %735 = vmatprep.subr.mxu0 0.0
    %736 = vmatpush1.msra.mxu0 %v696
    %737 = vmatprep.subr.mxu0 0.0
    %738 = vmatpush1.msra.mxu0 %v695
    %739 = vmatprep.subr.mxu0 0.0
    %740 = vmatpush1.msra.mxu0 %v694
    %741 = vmatprep.subr.mxu0 0.0
    %742 = vmatpush1.msra.mxu0 %v693
    %743 = vmatprep.subr.mxu0 0.0
    %744 = vmatpush2.msra.mxu0 0.0
    %745 = vmatprep.subr.mxu0 0.0
    %746 = vmatpush2.msra.mxu0 0.0
    %747 = vmatprep.subr.mxu0 0.0
    %748 = vmatpush2.msra.mxu0 0.0
    %749 = vmatprep.subr.mxu0 0.0
    %750 = vmatpush2.msra.mxu0 0.0
    %751 = vmatprep.subr.mxu0 0.0
    %752 = vmatpush2.msra.mxu0 0.0
    %753 = vmatprep.subr.mxu0 0.0
    %754 = vmatpush2.msra.mxu0 0.0
    %755 = vmatprep.subr.mxu0 0.0
    %756 = vmatpush2.msra.mxu0 0.0
    %757 = vmatprep.subr.mxu0 0.0
    %758 = vmatpush2.msra.mxu0 0.0
    %759 = vmatprep.subr.mxu0 0.0
    %760 = vmatpush2.msra.mxu0 0.0
    %761 = vmatprep.subr.mxu0 0.0
    %762 = vmatpush2.msra.mxu0 0.0
    %763 = vmatprep.subr.mxu0 0.0
    %764 = vmatpush2.msra.mxu0 0.0
    %765 = vmatprep.subr.mxu0 0.0
    %766 = vmatpush2.msra.mxu0 0.0
    %767 = vmatprep.subr.mxu0 0.0
    %768 = vmatpush2.msra.mxu0 0.0
    %769 = vmatprep.subr.mxu0 0.0
    %770 = vmatpush2.msra.mxu0 0.0
    %771 = vmatprep.subr.mxu0 0.0
    %772 = vmatpush2.msra.mxu0 0.0
    %773 = vmatprep.subr.mxu0 0.0
    %774 = vmatpush2.msra.mxu0 0.0
    %775 = vmatprep.mubr.f32.mxu0 0.0
    %776 = vmatmul.mubr.f32.gmra.mxu0 %v709
    %v777 = vpop.f32.mrf.mxu0
    %v778 = vadd.f32 %v706, %v777
    %v779 = vpop.f32.mrf.mxu0
    %780 = vdwg.mxu0
    %v781 = vmax.f32 %v778, 0.0
    %v782 = vld [vmem:[%s5] sm:$0xff]
    %v783 = vld [vmem:[%s5 + $0x8] sm:$0xff]
    %v784 = vld [vmem:[%s5 + $0x10] sm:$0xff]
    %v785 = vld [vmem:[%s5 + $0x18] sm:$0xff]
    %v786 = vld [vmem:[%s6] sm:$0x1]
    %v788 = vlaneseq
    %v789 = vshrl.u32 %v788, 7
    %v790 = vsub.s32 0, %v789
    %v791 = vrot.slane %v786, %v790
    %vm793 = vcmask 261120
    %v795 = vsel %vm793, %v781, 0
    %797 = vmatprep.subr.mxu0 0.0
    %798 = vmatpush1.msra.mxu0 0.0
    %799 = vmatprep.subr.mxu0 0.0
    %800 = vmatpush1.msra.mxu0 0.0
    %801 = vmatprep.subr.mxu0 0.0
    %802 = vmatpush1.msra.mxu0 0.0
    %803 = vmatprep.subr.mxu0 0.0
    %804 = vmatpush1.msra.mxu0 0.0
    %805 = vmatprep.subr.mxu0 0.0
    %806 = vmatpush1.msra.mxu0 0.0
    %807 = vmatprep.subr.mxu0 0.0
    %808 = vmatpush1.msra.mxu0 0.0
    %809 = vmatprep.subr.mxu0 0.0
    %810 = vmatpush1.msra.mxu0 0.0
    %811 = vmatprep.subr.mxu0 0.0
    %812 = vmatpush1.msra.mxu0 0.0
    %813 = vmatprep.subr.mxu0 0.0
    %814 = vmatpush1.msra.mxu0 0.0
    %815 = vmatprep.subr.mxu0 0.0
    %816 = vmatpush1.msra.mxu0 0.0
    %817 = vmatprep.subr.mxu0 0.0
    %818 = vmatpush1.msra.mxu0 0.0
    %819 = vmatprep.subr.mxu0 0.0
    %820 = vmatpush1.msra.mxu0 0.0
    %821 = vmatprep.subr.mxu0 0.0
    %822 = vmatpush1.msra.mxu0 %v785
    %823 = vmatprep.subr.mxu0 0.0
    %824 = vmatpush1.msra.mxu0 %v784
    %825 = vmatprep.subr.mxu0 0.0
    %826 = vmatpush1.msra.mxu0 %v783
    %827 = vmatprep.subr.mxu0 0.0
    %828 = vmatpush1.msra.mxu0 %v782
    %829 = vmatprep.subr.mxu0 0.0
    %830 = vmatpush2.msra.mxu0 0.0
    %831 = vmatprep.subr.mxu0 0.0
    %832 = vmatpush2.msra.mxu0 0.0
    %833 = vmatprep.subr.mxu0 0.0
    %834 = vmatpush2.msra.mxu0 0.0
    %835 = vmatprep.subr.mxu0 0.0
    %836 = vmatpush2.msra.mxu0 0.0
    %837 = vmatprep.subr.mxu0 0.0
    %838 = vmatpush2.msra.mxu0 0.0
    %839 = vmatprep.subr.mxu0 0.0
    %840 = vmatpush2.msra.mxu0 0.0
    %841 = vmatprep.subr.mxu0 0.0
    %842 = vmatpush2.msra.mxu0 0.0
    %843 = vmatprep.subr.mxu0 0.0
    %844 = vmatpush2.msra.mxu0 0.0
    %845 = vmatprep.subr.mxu0 0.0
    %846 = vmatpush2.msra.mxu0 0.0
    %847 = vmatprep.subr.mxu0 0.0
    %848 = vmatpush2.msra.mxu0 0.0
    %849 = vmatprep.subr.mxu0 0.0
    %850 = vmatpush2.msra.mxu0 0.0
    %851 = vmatprep.subr.mxu0 0.0
    %852 = vmatpush2.msra.mxu0 0.0
    %853 = vmatprep.subr.mxu0 0.0
    %854 = vmatpush2.msra.mxu0 0.0
    %855 = vmatprep.subr.mxu0 0.0
    %856 = vmatpush2.msra.mxu0 0.0
    %857 = vmatprep.subr.mxu0 0.0
    %858 = vmatpush2.msra.mxu0 0.0
    %859 = vmatprep.subr.mxu0 0.0
    %860 = vmatpush2.msra.mxu0 0.0
    %861 = vmatprep.mubr.f32.mxu0 0.0
    %862 = vmatmul.mubr.f32.gmra.mxu0 %v795
    %v863 = vpop.f32.mrf.mxu0
    %v864 = vadd.f32 %v791, %v863
    %v865 = vpop.f32.mrf.mxu0
    %866 = vdwg.mxu0
    %v867 = vmax.f32 %v864, 0.0
    %v868 = vld [vmem:[%s7] sm:$0xff]
    %v869 = vld [vmem:[%s7 + $0x8] sm:$0xff]
    %v870 = vld [vmem:[%s7 + $0x10] sm:$0xff]
    %v871 = vld [vmem:[%s7 + $0x18] sm:$0xff]
    %v872 = vld [vmem:[%s8] sm:$0x1]
    %v874 = vlaneseq
    %v875 = vshrl.u32 %v874, 7
    %v876 = vsub.s32 0, %v875
    %v877 = vrot.slane %v872, %v876
    %v880 = vsel %vm793, %v867, 0
    %882 = vmatprep.subr.mxu0 0.0
    %883 = vmatpush1.msra.mxu0 0.0
    %884 = vmatprep.subr.mxu0 0.0
    %885 = vmatpush1.msra.mxu0 0.0
    %886 = vmatprep.subr.mxu0 0.0
    %887 = vmatpush1.msra.mxu0 0.0
    %888 = vmatprep.subr.mxu0 0.0
    %889 = vmatpush1.msra.mxu0 0.0
    %890 = vmatprep.subr.mxu0 0.0
    %891 = vmatpush1.msra.mxu0 0.0
    %892 = vmatprep.subr.mxu0 0.0
    %893 = vmatpush1.msra.mxu0 0.0
    %894 = vmatprep.subr.mxu0 0.0
    %895 = vmatpush1.msra.mxu0 0.0
    %896 = vmatprep.subr.mxu0 0.0
    %897 = vmatpush1.msra.mxu0 0.0
    %898 = vmatprep.subr.mxu0 0.0
    %899 = vmatpush1.msra.mxu0 0.0
    %900 = vmatprep.subr.mxu0 0.0
    %901 = vmatpush1.msra.mxu0 0.0
    %902 = vmatprep.subr.mxu0 0.0
    %903 = vmatpush1.msra.mxu0 0.0
    %904 = vmatprep.subr.mxu0 0.0
    %905 = vmatpush1.msra.mxu0 0.0
    %906 = vmatprep.subr.mxu0 0.0
    %907 = vmatpush1.msra.mxu0 %v871
    %908 = vmatprep.subr.mxu0 0.0
    %909 = vmatpush1.msra.mxu0 %v870
    %910 = vmatprep.subr.mxu0 0.0
    %911 = vmatpush1.msra.mxu0 %v869
    %912 = vmatprep.subr.mxu0 0.0
    %913 = vmatpush1.msra.mxu0 %v868
    %914 = vmatprep.subr.mxu0 0.0
    %915 = vmatpush2.msra.mxu0 0.0
    %916 = vmatprep.subr.mxu0 0.0
    %917 = vmatpush2.msra.mxu0 0.0
    %918 = vmatprep.subr.mxu0 0.0
    %919 = vmatpush2.msra.mxu0 0.0
    %920 = vmatprep.subr.mxu0 0.0
    %921 = vmatpush2.msra.mxu0 0.0
    %922 = vmatprep.subr.mxu0 0.0
    %923 = vmatpush2.msra.mxu0 0.0
    %924 = vmatprep.subr.mxu0 0.0
    %925 = vmatpush2.msra.mxu0 0.0
    %926 = vmatprep.subr.mxu0 0.0
    %927 = vmatpush2.msra.mxu0 0.0
    %928 = vmatprep.subr.mxu0 0.0
    %929 = vmatpush2.msra.mxu0 0.0
    %930 = vmatprep.subr.mxu0 0.0
    %931 = vmatpush2.msra.mxu0 0.0
    %932 = vmatprep.subr.mxu0 0.0
    %933 = vmatpush2.msra.mxu0 0.0
    %934 = vmatprep.subr.mxu0 0.0
    %935 = vmatpush2.msra.mxu0 0.0
    %936 = vmatprep.subr.mxu0 0.0
    %937 = vmatpush2.msra.mxu0 0.0
    %938 = vmatprep.subr.mxu0 0.0
    %939 = vmatpush2.msra.mxu0 0.0
    %940 = vmatprep.subr.mxu0 0.0
    %941 = vmatpush2.msra.mxu0 0.0
    %942 = vmatprep.subr.mxu0 0.0
    %943 = vmatpush2.msra.mxu0 0.0
    %944 = vmatprep.subr.mxu0 0.0
    %945 = vmatpush2.msra.mxu0 0.0
    %946 = vmatprep.mubr.f32.mxu0 0.0
    %947 = vmatmul.mubr.f32.gmra.mxu0 %v880
    %v948 = vpop.f32.mrf.mxu0
    %v949 = vadd.f32 %v877, %v948
    %v950 = vpop.f32.mrf.mxu0
    %951 = vdwg.mxu0
    %953 = vset.pattern.permute.xlu0 6
    %954 = vperm.xlu0 %953, %v949
    %v955 = vpop.permute.xlu0 %954
    %v957 = vadd.f32 %v955, %v949
    %vm958 = vcmask 41984
    %v959 = vsel %vm958, %v949, 0.0
    %960 = vadd.xlane.f32.xlu0 %v959
    %v961 = vpop.xlane.xlu0 %960
    %v962 = vrcp.pop 6.0
    %v963 = vmul.f32 %v961, %v962
    %v964 = vsub.f32 %v957, %v963
    %965 = vst.msk [vmem:[#allocation2] sm:$0x3] %vm958, %v964
    // Predicated region
    $region38: #{dqn_forward.3} parent=1 // pred_check
      _
    $region39: #{dqn_forward.3} parent=1 // pred_check_branch
      %967 = sbr.rel (0) target = $region41
    $region40: #{dqn_forward.3} parent=1 // pred_region
      %s969 = ssub.s32 32, 32
      %970 = vsyncadd [#allocation3], %s969
      %s972 = sshll.u32 [#allocation2], 4
      %s973 = int_to_ptr.vmem [resolvable:$true] %s972
      %975 = dma.vmem_to_hbm [thread:$0]  %s973, 32, %s9, [#allocation3]
    $region41: #{dqn_forward.3} parent=1 // pred_fallthru
      _
    // Predicated region
    $region42: #{dqn_forward.3} parent=1 // pred_check
      _
    $region43: #{dqn_forward.3} parent=1 // pred_check_branch
      %977 = sbr.rel (0) target = $region45
    $region44: #{dqn_forward.3} parent=1 // pred_region
      %978 = dma.done [#allocation3], 32
    $region45: #{dqn_forward.3} parent=1 // pred_fallthru
      _
    %979 = vsyncpa [#allocation3], 1

</llo_original>
